<compile_context>
chip_gen: v5e
topology: v5e:2x2
jax: 0.10.0
libtpu: 0.0.40
codegen_flags: <defaults>
</compile_context>

<pallas_src>
import functools

import jax
import jax.numpy as jnp
import numpy as np
from jax import lax
from jax.experimental import pallas as pl
from jax.experimental.pallas import tpu as pltpu

LN_EPS = 1e-5


def _layernorm(x, gamma, beta):
    mu = jnp.mean(x, axis=-1, keepdims=True)
    var = jnp.mean((x - mu) ** 2, axis=-1, keepdims=True)
    return (x - mu) * lax.rsqrt(var + LN_EPS) * gamma + beta


# ---------------------------------------------------------------------------
# Fused kernel: pos-add + L residual attention blocks + ln_final + EOT gather
# + text projection.  grid = (batch_blocks, L); activation lives in act_ref.
# ---------------------------------------------------------------------------
def _text_encoder_kernel(eot_ref,                               # scalar prefetch (SMEM)
                         x_ref, pos_ref, bias_ref,
                         wqkv_ref, bqkv_ref, wo_ref, vecd_ref,
                         w1_ref, b1_ref, w2_ref,
                         lnf_ref, proj_ref,
                         o_ref, act_ref, *, num_heads):
    bt, S, D = x_ref.shape
    H = num_heads
    Dh = D // H
    scale = 1.0 / (Dh ** 0.5)
    bf16 = jnp.bfloat16

    # Grid ids are read ONCE at the top level (never inside pl.when bodies).
    bblk = pl.program_id(0)
    l = pl.program_id(1)
    last_l = pl.num_programs(1) - 1

    # ---- layer 0: load prompts block + positional embedding into VMEM ----
    @pl.when(l == 0)
    def _init():
        x0 = x_ref[...].astype(jnp.float32) + pos_ref[...].astype(jnp.float32)
        act_ref[...] = x0.reshape(bt * S, D)

    x = act_ref[...]                                    # (bt*S, D) f32, resident

    vec = vecd_ref[...]                                 # (6, D) f32 packed vectors
    ln1_g, ln1_b = vec[0:1], vec[1:2]
    ln2_g, ln2_b = vec[2:3], vec[3:4]
    b_out, b_fc2 = vec[4:5], vec[5:6]

    # ---- attention sub-block: x = x + W_o(attn(LN1(x))), causal ----
    xn = _layernorm(x, ln1_g, ln1_b).astype(bf16)
    qkv = jnp.dot(xn, wqkv_ref[...],
                  preferred_element_type=jnp.float32) + bqkv_ref[...]
    q = (qkv[:, :D] * scale).astype(bf16).reshape(bt, S, D)   # scale folded into q
    k = qkv[:, D:2 * D].astype(bf16).reshape(bt, S, D)
    v = qkv[:, 2 * D:].astype(bf16).reshape(bt, S, D)
    wo = wo_ref[...]                                    # (D, D) bf16
    bias = bias_ref[...]                                # (S, S) additive causal mask

    acc = jnp.zeros((bt * S, D), jnp.float32)
    for h in range(H):                                  # static head loop, no concat
        sl = slice(h * Dh, (h + 1) * Dh)
        s = jnp.einsum("bqc,bkc->bqk", q[:, :, sl], k[:, :, sl],
                       preferred_element_type=jnp.float32) + bias
        p = jax.nn.softmax(s, axis=-1).astype(bf16)     # mask/softmax stay f32->bf16
        ho = jnp.einsum("bqk,bkc->bqc", p, v[:, :, sl],
                        preferred_element_type=jnp.float32)
        # accumulate the output projection per head (no concatenate needed)
        acc = acc + jnp.dot(ho.astype(bf16).reshape(bt * S, Dh), wo[sl, :],
                            preferred_element_type=jnp.float32)
    x = x + acc + b_out

    # ---- MLP sub-block: x = x + fc2(quick_gelu(fc1(LN2(x)))) ----
    xn2 = _layernorm(x, ln2_g, ln2_b).astype(bf16)
    h1 = jnp.dot(xn2, w1_ref[...],
                 preferred_element_type=jnp.float32) + b1_ref[...]
    h1 = h1 * jax.nn.sigmoid(1.702 * h1)                # QuickGELU (f32)
    h2 = jnp.dot(h1.astype(bf16), w2_ref[...],
                 preferred_element_type=jnp.float32) + b_fc2
    x = x + h2

    act_ref[...] = x                                    # single full-width store

    # ---- last layer: ln_final on EOT rows + text projection ----
    @pl.when(l == last_l)
    def _final():
        lnf = lnf_ref[...]                              # (2, D): gamma, beta
        rows = []
        for i in range(bt):                             # static loop over rows
            idx = eot_ref[bblk * bt + i]
            rows.append(act_ref[pl.ds(i * S + idx, 1), :])   # (1, D) f32
        xe = jnp.concatenate(rows, axis=0)              # (bt, D)
        xen = _layernorm(xe, lnf[0:1], lnf[1:2])
        o_ref[...] = jnp.dot(xen.astype(bf16), proj_ref[...],
                             preferred_element_type=jnp.float32).astype(o_ref.dtype)


# ---------------------------------------------------------------------------
# Wrapper
# ---------------------------------------------------------------------------
def _physical_vmem_bytes():
    try:
        return int(pltpu.get_tpu_info().vmem_capacity_bytes)
    except Exception:          # not on TPU / old jax -> conservative default
        return 128 << 20


def _choose_block_b(B, Sp, D, act_budget_bytes):
    """Largest batch block dividing B with a legal (bt, E) out block
    (bt % 8 == 0 or bt == B) that fits a rough f32 working-set budget.
    Prefer >= 2 batch blocks so the 'parallel' axis can shard across cores."""
    divisors = [d for d in range(1, B + 1) if B % d == 0]
    valid = [d for d in divisors if d == B or d % 8 == 0]
    per_b = Sp * D * 4 * 12                      # ~f32 working set per batch row
    fitting = [d for d in valid if d * per_b <= act_budget_bytes]
    if not fitting:
        return min(valid)
    multi = [d for d in fitting if B // d >= 2]
    if multi and max(multi) >= min(8, B):
        return max(multi)
    return max(fitting)


def text_encoder_forward(prompts, tokenized_prompts, params):
    B, S, D = prompts.shape
    E = params["proj"].shape[-1]
    L = params["wq"].shape[0]
    H = params["num_heads"]
    bf16 = jnp.bfloat16

    # ---- pad sequence to a multiple of 8 (layout-preserving reshapes) ----
    Sp = ((S + 7) // 8) * 8
    pad = Sp - S
    prompts_p = jnp.pad(prompts, ((0, 0), (0, pad), (0, 0))) if pad else prompts
    pos_p = jnp.pad(params["pos"], ((0, pad), (0, 0))) if pad else params["pos"]

    # ---- additive causal (+ key padding) bias, built once ----
    r = jnp.arange(Sp)[:, None]
    c = jnp.arange(Sp)[None, :]
    attn_bias = jnp.where((c <= r) & (c < S), 0.0, -1e30).astype(jnp.float32)

    # ---- fused qkv weights + packed per-layer vectors ----
    wqkv = jnp.concatenate([params["wq"], params["wk"], params["wv"]],
                           axis=-1).astype(bf16)                    # (L, D, 3D)
    bqkv = jnp.concatenate([params["bq"], params["bk"], params["bv"]],
                           axis=-1)                                 # (L, 1, 3D)
    vecd = jnp.concatenate([params["ln1_g"], params["ln1_b"],
                            params["ln2_g"], params["ln2_b"],
                            params["bo"], params["b2"]], axis=1)    # (L, 6, D)
    lnf = jnp.concatenate([params["lnf_g"], params["lnf_b"]], axis=0)  # (2, D)

    eot_idx = jnp.argmax(tokenized_prompts, axis=-1).astype(jnp.int32)

    # ---- generation-aware block / VMEM sizing ----
    phys_vmem = _physical_vmem_bytes()
    act_budget = min(phys_vmem // 3, 40 << 20)
    bt = _choose_block_b(B, Sp, D, act_budget)

    weight_db = 2 * 2 * 12 * D * D                     # bf16 big weights, 2 buffers
    small_db = 2 * 4 * (3 * D + 6 * D + 4 * D)         # f32 per-layer vectors
    const_b = (2 * bt * Sp * D * 4 + Sp * D * 4 + Sp * Sp * 4
               + 2 * D * 4 + D * E * 2 + 2 * bt * E * 4)
    act_b = bt * Sp * D * 4 * 13                       # scratch + live intermediates
    est = weight_db + small_db + const_b + act_b
    vmem_limit = int(min(max(int(est * 1.25), 24 << 20), phys_vmem * 3 // 4))

    def _x_map(b, l, eot):    return (b, 0, 0)
    def _c2_map(b, l, eot):   return (0, 0)
    def _l_map(b, l, eot):    return (l, 0, 0)
    def _out_map(b, l, eot):  return (b, 0)

    def wspec(d1, d2):
        return pl.BlockSpec((None, d1, d2), _l_map)

    in_specs = [
        pl.BlockSpec((bt, Sp, D), _x_map),             # prompts (padded)
        pl.BlockSpec((Sp, D), _c2_map),                # positional embedding
        pl.BlockSpec((Sp, Sp), _c2_map),               # additive causal bias
        wspec(D, 3 * D),                               # fused W_qkv
        wspec(1, 3 * D),                               # fused b_qkv
        wspec(D, D),                                   # W_out
        wspec(6, D),                                   # [ln1_g,ln1_b,ln2_g,ln2_b,b_out,b_fc2]
        wspec(D, 4 * D),                               # W_fc1
        wspec(1, 4 * D),                               # b_fc1
        wspec(4 * D, D),                               # W_fc2
        pl.BlockSpec((2, D), _c2_map),                 # ln_final gamma/beta
        pl.BlockSpec((D, E), _c2_map),                 # text projection
    ]
    out_spec = pl.BlockSpec((bt, E), _out_map)

    grid_spec = pltpu.PrefetchScalarGridSpec(
        num_scalar_prefetch=1,
        grid=(B // bt, L),
        in_specs=in_specs,
        out_specs=out_spec,
        scratch_shapes=[pltpu.VMEM((bt * Sp, D), jnp.float32)],
    )

    try:
        compiler_params = pltpu.CompilerParams(
            dimension_semantics=("parallel", "arbitrary"),
            vmem_limit_bytes=vmem_limit)
    except TypeError:                                   # very old param signature
        compiler_params = pltpu.CompilerParams(
            dimension_semantics=("parallel", "arbitrary"))

    kernel = functools.partial(_text_encoder_kernel, num_heads=H)
    return pl.pallas_call(
        kernel,
        out_shape=jax.ShapeDtypeStruct((B, E), jnp.float32),
        grid_spec=grid_spec,
        compiler_params=compiler_params,
    )(eot_idx, prompts_p, pos_p, attn_bias,
      wqkv, bqkv, params["wo"].astype(bf16), vecd,
      params["w1"].astype(bf16), params["b1"], params["w2"].astype(bf16),
      lnf, params["proj"].astype(bf16))


# ---------------------------------------------------------------------------
# Pure-JAX reference mirroring the same numerics (bf16 matmuls, f32 accum)
# ---------------------------------------------------------------------------
def reference_forward(prompts, tokenized_prompts, params):
    bf16 = jnp.bfloat16
    H = params["num_heads"]
    x = prompts.astype(jnp.float32) + params["pos"][None]
    B, S, D = x.shape
    Dh = D // H
    scale = 1.0 / (Dh ** 0.5)
    causal = jnp.tril(jnp.ones((S, S), dtype=bool))
    L = params["wq"].shape[0]

    def mm(a, w):
        return jnp.einsum("...d,df->...f", a.astype(bf16), w.astype(bf16),
                          preferred_element_type=jnp.float32)

    for l in range(L):
        xn = _layernorm(x, params["ln1_g"][l], params["ln1_b"][l])
        q = (mm(xn, params["wq"][l]) + params["bq"][l]) * scale
        k = mm(xn, params["wk"][l]) + params["bk"][l]
        v = mm(xn, params["wv"][l]) + params["bv"][l]

        def split_heads(t):
            return t.reshape(B, S, H, Dh).transpose(0, 2, 1, 3).astype(bf16)

        qh, kh, vh = split_heads(q), split_heads(k), split_heads(v)
        s = jnp.einsum("bhqd,bhkd->bhqk", qh, kh, preferred_element_type=jnp.float32)
        s = jnp.where(causal, s, -1e30)
        p = jax.nn.softmax(s, axis=-1).astype(bf16)
        a = jnp.einsum("bhqk,bhkd->bhqd", p, vh, preferred_element_type=jnp.float32)
        a = a.transpose(0, 2, 1, 3).reshape(B, S, D)
        x = x + (mm(a, params["wo"][l]) + params["bo"][l])

        xn2 = _layernorm(x, params["ln2_g"][l], params["ln2_b"][l])
        h1 = mm(xn2, params["w1"][l]) + params["b1"][l]
        h1 = h1 * jax.nn.sigmoid(1.702 * h1)
        x = x + (mm(h1, params["w2"][l]) + params["b2"][l])

    xn = _layernorm(x, params["lnf_g"], params["lnf_b"])
    eot = jnp.argmax(tokenized_prompts, axis=-1)
    xe = xn[jnp.arange(B), eot]
    return mm(xe, params["proj"])


# ---------------------------------------------------------------------------
# Deterministic synthetic parameters (per-layer tensors stacked on a leading L)
# ---------------------------------------------------------------------------
def init_params(key, *, S, D, H, L, E):
    f32 = jnp.float32
    ks = jax.random.split(key, 20)

    def nrm(k, shape, scl):
        return scl * jax.random.normal(k, shape, f32)

    return dict(
        pos=nrm(ks[0], (S, D), 0.02),
        lnf_g=1.0 + nrm(ks[1], (1, D), 0.01),
        lnf_b=nrm(ks[2], (1, D), 0.01),
        proj=nrm(ks[3], (D, E), 0.05),
        ln1_g=1.0 + nrm(ks[4], (L, 1, D), 0.01),
        ln1_b=nrm(ks[5], (L, 1, D), 0.01),
        wq=nrm(ks[6], (L, D, D), 0.05), bq=nrm(ks[7], (L, 1, D), 0.01),
        wk=nrm(ks[8], (L, D, D), 0.05), bk=nrm(ks[9], (L, 1, D), 0.01),
        wv=nrm(ks[10], (L, D, D), 0.05), bv=nrm(ks[11], (L, 1, D), 0.01),
        wo=nrm(ks[12], (L, D, D), 0.05), bo=nrm(ks[13], (L, 1, D), 0.01),
        ln2_g=1.0 + nrm(ks[14], (L, 1, D), 0.01),
        ln2_b=nrm(ks[15], (L, 1, D), 0.01),
        w1=nrm(ks[16], (L, D, 4 * D), 0.05), b1=nrm(ks[17], (L, 1, 4 * D), 0.01),
        w2=nrm(ks[18], (L, 4 * D, D), 0.05), b2=nrm(ks[19], (L, 1, D), 0.01),
        num_heads=H,
    )


if __name__ == "__main__":
    B, S, D, H, L, E = 2, 8, 32, 4, 2, 16   # batch, seq, width, heads, layers, proj dim

    key = jax.random.PRNGKey(0)
    kp, kx = jax.random.split(key)
    params = init_params(kp, S=S, D=D, H=H, L=L, E=E)

    prompts = 0.1 * jax.random.normal(kx, (B, S, D), jnp.float32)
    tokens = jax.random.randint(jax.random.PRNGKey(1), (B, S), 1, 1000, jnp.int32)
    tokens = tokens.at[0, 5].set(49407).at[1, 7].set(49407)   # EOT token positions

    out = jax.block_until_ready(text_encoder_forward(prompts, tokens, params))
    assert out.shape == (B, E)

    ref = reference_forward(prompts, tokens, params)
    np.testing.assert_allclose(np.asarray(out), np.asarray(ref, dtype=np.float32),
                               rtol=5e-3, atol=5e-3)

    print("KERNEL_OK")
</pallas_src>

<mosaic_0001>
module attributes {stable_mosaic.version = 11 : i64} {
  func.func @_text_encoder_kernel(%arg0: i32, %arg1: i32, %arg2: memref<2xi32, #tpu.memory_space<smem>>, %arg3: memref<2x8x32xf32, #tpu.memory_space<vmem>>, %arg4: memref<8x32xf32, #tpu.memory_space<vmem>>, %arg5: memref<8x8xf32, #tpu.memory_space<vmem>>, %arg6: memref<1x32x96xbf16, #tpu.memory_space<vmem>>, %arg7: memref<1x1x96xf32, #tpu.memory_space<vmem>>, %arg8: memref<1x32x32xbf16, #tpu.memory_space<vmem>>, %arg9: memref<1x6x32xf32, #tpu.memory_space<vmem>>, %arg10: memref<1x32x128xbf16, #tpu.memory_space<vmem>>, %arg11: memref<1x1x128xf32, #tpu.memory_space<vmem>>, %arg12: memref<1x128x32xbf16, #tpu.memory_space<vmem>>, %arg13: memref<2x32xf32, #tpu.memory_space<vmem>>, %arg14: memref<32x16xbf16, #tpu.memory_space<vmem>>, %arg15: memref<2x16xf32, #tpu.memory_space<vmem>>, %arg16: memref<16x32xf32, #tpu.memory_space<vmem>>) attributes {dimension_semantics = [#tpu.dimension_semantics<parallel>, #tpu.dimension_semantics<arbitrary>], iteration_bounds = array<i64: 1, 2>, scalar_prefetch = 1 : i64, scratch_operands = 1 : i64, tpu.core_type = #tpu.core_type<tc>, window_params = [{transform_indices = @transform_0, window_bounds = array<i64: 2, 8, 32>}, {pipeline_mode = #tpu.pipeline_mode<synchronous>, transform_indices = @transform_1, window_bounds = array<i64: 8, 32>}, {pipeline_mode = #tpu.pipeline_mode<synchronous>, transform_indices = @transform_2, window_bounds = array<i64: 8, 8>}, {transform_indices = @transform_3, window_bounds = array<i64: 1, 32, 96>}, {transform_indices = @transform_4, window_bounds = array<i64: 1, 1, 96>}, {transform_indices = @transform_5, window_bounds = array<i64: 1, 32, 32>}, {transform_indices = @transform_6, window_bounds = array<i64: 1, 6, 32>}, {transform_indices = @transform_7, window_bounds = array<i64: 1, 32, 128>}, {transform_indices = @transform_8, window_bounds = array<i64: 1, 1, 128>}, {transform_indices = @transform_9, window_bounds = array<i64: 1, 128, 32>}, {pipeline_mode = #tpu.pipeline_mode<synchronous>, transform_indices = @transform_10, window_bounds = array<i64: 2, 32>}, {pipeline_mode = #tpu.pipeline_mode<synchronous>, transform_indices = @transform_11, window_bounds = array<i64: 32, 16>}, {transform_indices = @transform_12, window_bounds = array<i64: 2, 16>}]} {
    %c0_i32 = arith.constant 0 : i32
    %0 = arith.cmpi eq, %arg1, %c0_i32 : i32
    %1 = arith.extui %0 : i1 to i32
    %c0_i32_0 = arith.constant 0 : i32
    %2 = arith.cmpi ne, %1, %c0_i32_0 : i32
    scf.if %2 {
      %c0_68 = arith.constant 0 : index
      %c0_69 = arith.constant 0 : index
      %c0_70 = arith.constant 0 : index
      %209 = vector.load %arg3[%c0_68, %c0_69, %c0_70] : memref<2x8x32xf32, #tpu.memory_space<vmem>>, vector<2x8x32xf32>
      %c0_71 = arith.constant 0 : index
      %c0_72 = arith.constant 0 : index
      %210 = vector.load %arg4[%c0_71, %c0_72] : memref<8x32xf32, #tpu.memory_space<vmem>>, vector<8x32xf32>
      %211 = vector.shape_cast %210 : vector<8x32xf32> to vector<1x8x32xf32>
      %212 = vector.broadcast %211 : vector<1x8x32xf32> to vector<2x8x32xf32>
      %213 = arith.addf %209, %212 : vector<2x8x32xf32>
      %214 = vector.shape_cast %213 : vector<2x8x32xf32> to vector<16x32xf32>
      %c0_73 = arith.constant 0 : index
      %c0_74 = arith.constant 0 : index
      %215 = vector.load %arg16[%c0_73, %c0_74] : memref<16x32xf32, #tpu.memory_space<vmem>>, vector<16x32xf32>
      tpu.vector_store %arg16[%c0_73, %c0_74], %214 {strides = array<i32>} : memref<16x32xf32, #tpu.memory_space<vmem>>, vector<16x32xf32>,
    } else {
    }
    %c0 = arith.constant 0 : index
    %c0_1 = arith.constant 0 : index
    %3 = vector.load %arg16[%c0, %c0_1] : memref<16x32xf32, #tpu.memory_space<vmem>>, vector<16x32xf32>
    %c0_2 = arith.constant 0 : index
    %c0_3 = arith.constant 0 : index
    %c0_4 = arith.constant 0 : index
    %4 = vector.load %arg9[%c0_2, %c0_3, %c0_4] : memref<1x6x32xf32, #tpu.memory_space<vmem>>, vector<1x6x32xf32>
    %5 = vector.shape_cast %4 : vector<1x6x32xf32> to vector<6x32xf32>
    %6 = vector.extract_strided_slice %5 {offsets = [0, 0], sizes = [1, 32], strides = [1, 1]} : vector<6x32xf32> to vector<1x32xf32>
    %7 = vector.extract_strided_slice %5 {offsets = [1, 0], sizes = [1, 32], strides = [1, 1]} : vector<6x32xf32> to vector<1x32xf32>
    %8 = vector.extract_strided_slice %5 {offsets = [2, 0], sizes = [1, 32], strides = [1, 1]} : vector<6x32xf32> to vector<1x32xf32>
    %9 = vector.extract_strided_slice %5 {offsets = [3, 0], sizes = [1, 32], strides = [1, 1]} : vector<6x32xf32> to vector<1x32xf32>
    %10 = vector.extract_strided_slice %5 {offsets = [4, 0], sizes = [1, 32], strides = [1, 1]} : vector<6x32xf32> to vector<1x32xf32>
    %11 = vector.extract_strided_slice %5 {offsets = [5, 0], sizes = [1, 32], strides = [1, 1]} : vector<6x32xf32> to vector<1x32xf32>
    %cst = arith.constant dense<0.000000e+00> : vector<16xf32>
    %12 = vector.multi_reduction <add>, %3, %cst [1] : vector<16x32xf32> to vector<16xf32>
    %13 = vector.shape_cast %12 : vector<16xf32> to vector<16x1xf32>
    %cst_5 = arith.constant 3.200000e+01 : f32
    %14 = vector.broadcast %cst_5 : f32 to vector<16x1xf32>
    %15 = arith.divf %13, %14 : vector<16x1xf32>
    %16 = vector.broadcast %15 : vector<16x1xf32> to vector<16x32xf32>
    %17 = arith.subf %3, %16 : vector<16x32xf32>
    %18 = arith.mulf %17, %17 : vector<16x32xf32>
    %cst_6 = arith.constant dense<0.000000e+00> : vector<16xf32>
    %19 = vector.multi_reduction <add>, %18, %cst_6 [1] : vector<16x32xf32> to vector<16xf32>
    %20 = vector.shape_cast %19 : vector<16xf32> to vector<16x1xf32>
    %cst_7 = arith.constant 3.200000e+01 : f32
    %21 = vector.broadcast %cst_7 : f32 to vector<16x1xf32>
    %22 = arith.divf %20, %21 : vector<16x1xf32>
    %23 = vector.broadcast %15 : vector<16x1xf32> to vector<16x32xf32>
    %24 = arith.subf %3, %23 : vector<16x32xf32>
    %cst_8 = arith.constant 9.99999974E-6 : f32
    %25 = vector.broadcast %cst_8 : f32 to vector<16x1xf32>
    %26 = arith.addf %22, %25 : vector<16x1xf32>
    %27 = math.rsqrt %26 : vector<16x1xf32>
    %28 = vector.broadcast %27 : vector<16x1xf32> to vector<16x32xf32>
    %29 = arith.mulf %24, %28 : vector<16x32xf32>
    %30 = vector.broadcast %6 : vector<1x32xf32> to vector<16x32xf32>
    %31 = arith.mulf %29, %30 : vector<16x32xf32>
    %32 = vector.broadcast %7 : vector<1x32xf32> to vector<16x32xf32>
    %33 = arith.addf %31, %32 : vector<16x32xf32>
    %34 = arith.truncf %33 : vector<16x32xf32> to vector<16x32xbf16>
    %c0_9 = arith.constant 0 : index
    %c0_10 = arith.constant 0 : index
    %c0_11 = arith.constant 0 : index
    %35 = vector.load %arg6[%c0_9, %c0_10, %c0_11] : memref<1x32x96xbf16, #tpu.memory_space<vmem>>, vector<1x32x96xbf16>
    %36 = vector.shape_cast %35 : vector<1x32x96xbf16> to vector<32x96xbf16>
    %cst_12 = arith.constant dense<0.000000e+00> : vector<16x96xf32>
    %37 = tpu.matmul %34, %36, %cst_12 {dimension_numbers = #tpu.dot_dimension_numbers<[1], [0], [0], [1], [0, 0, 1, 1], [], []>} : vector<16x32xbf16>, vector<32x96xbf16>, vector<16x96xf32> -> vector<16x96xf32>
    %c0_13 = arith.constant 0 : index
    %c0_14 = arith.constant 0 : index
    %c0_15 = arith.constant 0 : index
    %38 = vector.load %arg7[%c0_13, %c0_14, %c0_15] : memref<1x1x96xf32, #tpu.memory_space<vmem>>, vector<1x1x96xf32>
    %39 = vector.shape_cast %38 : vector<1x1x96xf32> to vector<1x96xf32>
    %40 = vector.broadcast %39 : vector<1x96xf32> to vector<16x96xf32>
    %41 = arith.addf %37, %40 : vector<16x96xf32>
    %42 = vector.extract_strided_slice %41 {offsets = [0, 0], sizes = [16, 32], strides = [1, 1]} : vector<16x96xf32> to vector<16x32xf32>
    %cst_16 = arith.constant 0.353553385 : f32
    %43 = vector.broadcast %cst_16 : f32 to vector<16x32xf32>
    %44 = arith.mulf %42, %43 : vector<16x32xf32>
    %45 = arith.truncf %44 : vector<16x32xf32> to vector<16x32xbf16>
    %46 = vector.shape_cast %45 : vector<16x32xbf16> to vector<2x8x32xbf16>
    %47 = vector.extract_strided_slice %41 {offsets = [0, 32], sizes = [16, 32], strides = [1, 1]} : vector<16x96xf32> to vector<16x32xf32>
    %48 = arith.truncf %47 : vector<16x32xf32> to vector<16x32xbf16>
    %49 = vector.shape_cast %48 : vector<16x32xbf16> to vector<2x8x32xbf16>
    %50 = vector.extract_strided_slice %41 {offsets = [0, 64], sizes = [16, 32], strides = [1, 1]} : vector<16x96xf32> to vector<16x32xf32>
    %51 = arith.truncf %50 : vector<16x32xf32> to vector<16x32xbf16>
    %52 = vector.shape_cast %51 : vector<16x32xbf16> to vector<2x8x32xbf16>
    %c0_17 = arith.constant 0 : index
    %c0_18 = arith.constant 0 : index
    %c0_19 = arith.constant 0 : index
    %53 = vector.load %arg8[%c0_17, %c0_18, %c0_19] : memref<1x32x32xbf16, #tpu.memory_space<vmem>>, vector<1x32x32xbf16>
    %54 = vector.shape_cast %53 : vector<1x32x32xbf16> to vector<32x32xbf16>
    %c0_20 = arith.constant 0 : index
    %c0_21 = arith.constant 0 : index
    %55 = vector.load %arg5[%c0_20, %c0_21] : memref<8x8xf32, #tpu.memory_space<vmem>>, vector<8x8xf32>
    %cst_22 = arith.constant 0.000000e+00 : f32
    %56 = vector.broadcast %cst_22 : f32 to vector<16x32xf32>
    %57 = vector.extract_strided_slice %46 {offsets = [0, 0, 0], sizes = [2, 8, 8], strides = [1, 1, 1]} : vector<2x8x32xbf16> to vector<2x8x8xbf16>
    %58 = vector.extract_strided_slice %49 {offsets = [0, 0, 0], sizes = [2, 8, 8], strides = [1, 1, 1]} : vector<2x8x32xbf16> to vector<2x8x8xbf16>
    "tpu.trace_start"() <{level = 10 : i32, message = "bqc,bkc->bqk"}> : () -> ()
    %cst_23 = arith.constant dense<0.000000e+00> : vector<2x8x8xf32>
    %59 = tpu.matmul %57, %58, %cst_23 {dimension_numbers = #tpu.dot_dimension_numbers<[2], [2], [1], [1], [0, 0, 0, 1, 1, 1], [0], [0]>} : vector<2x8x8xbf16>, vector<2x8x8xbf16>, vector<2x8x8xf32> -> vector<2x8x8xf32>
    "tpu.trace_stop"() : () -> ()
    %60 = vector.shape_cast %55 : vector<8x8xf32> to vector<1x8x8xf32>
    %61 = vector.broadcast %60 : vector<1x8x8xf32> to vector<2x8x8xf32>
    %62 = arith.addf %59, %61 : vector<2x8x8xf32>
    %cst_24 = arith.constant dense<0xFF800000> : vector<2x8xf32>
    %63 = vector.multi_reduction <maximumf>, %62, %cst_24 [2] : vector<2x8x8xf32> to vector<2x8xf32>
    %cst_25 = arith.constant 0xFF800000 : f32
    %64 = vector.broadcast %cst_25 : f32 to vector<2x8xf32>
    %65 = arith.maximumf %64, %63 : vector<2x8xf32>
    %66 = vector.shape_cast %65 : vector<2x8xf32> to vector<2x8x1xf32>
    %67 = vector.broadcast %66 : vector<2x8x1xf32> to vector<2x8x8xf32>
    %68 = arith.subf %62, %67 : vector<2x8x8xf32>
    %69 = math.exp %68 : vector<2x8x8xf32>
    %cst_26 = arith.constant dense<0.000000e+00> : vector<2x8xf32>
    %70 = vector.multi_reduction <add>, %69, %cst_26 [2] : vector<2x8x8xf32> to vector<2x8xf32>
    %71 = vector.shape_cast %70 : vector<2x8xf32> to vector<2x8x1xf32>
    %72 = vector.broadcast %71 : vector<2x8x1xf32> to vector<2x8x8xf32>
    %73 = arith.divf %69, %72 : vector<2x8x8xf32>
    %74 = arith.truncf %73 : vector<2x8x8xf32> to vector<2x8x8xbf16>
    %75 = vector.extract_strided_slice %52 {offsets = [0, 0, 0], sizes = [2, 8, 8], strides = [1, 1, 1]} : vector<2x8x32xbf16> to vector<2x8x8xbf16>
    "tpu.trace_start"() <{level = 10 : i32, message = "bqk,bkc->bqc"}> : () -> ()
    %cst_27 = arith.constant dense<0.000000e+00> : vector<2x8x8xf32>
    %76 = tpu.matmul %74, %75, %cst_27 {dimension_numbers = #tpu.dot_dimension_numbers<[2], [1], [1], [2], [0, 0, 0, 1, 1, 2], [0], [0]>} : vector<2x8x8xbf16>, vector<2x8x8xbf16>, vector<2x8x8xf32> -> vector<2x8x8xf32>
    "tpu.trace_stop"() : () -> ()
    %77 = arith.truncf %76 : vector<2x8x8xf32> to vector<2x8x8xbf16>
    %78 = vector.shape_cast %77 : vector<2x8x8xbf16> to vector<16x8xbf16>
    %79 = vector.extract_strided_slice %54 {offsets = [0, 0], sizes = [8, 32], strides = [1, 1]} : vector<32x32xbf16> to vector<8x32xbf16>
    %cst_28 = arith.constant dense<0.000000e+00> : vector<16x32xf32>
    %80 = tpu.matmul %78, %79, %cst_28 {dimension_numbers = #tpu.dot_dimension_numbers<[1], [0], [0], [1], [0, 0, 1, 1], [], []>} : vector<16x8xbf16>, vector<8x32xbf16>, vector<16x32xf32> -> vector<16x32xf32>
    %81 = arith.addf %56, %80 : vector<16x32xf32>
    %82 = vector.extract_strided_slice %46 {offsets = [0, 0, 8], sizes = [2, 8, 8], strides = [1, 1, 1]} : vector<2x8x32xbf16> to vector<2x8x8xbf16>
    %83 = vector.extract_strided_slice %49 {offsets = [0, 0, 8], sizes = [2, 8, 8], strides = [1, 1, 1]} : vector<2x8x32xbf16> to vector<2x8x8xbf16>
    "tpu.trace_start"() <{level = 10 : i32, message = "bqc,bkc->bqk"}> : () -> ()
    %cst_29 = arith.constant dense<0.000000e+00> : vector<2x8x8xf32>
    %84 = tpu.matmul %82, %83, %cst_29 {dimension_numbers = #tpu.dot_dimension_numbers<[2], [2], [1], [1], [0, 0, 0, 1, 1, 1], [0], [0]>} : vector<2x8x8xbf16>, vector<2x8x8xbf16>, vector<2x8x8xf32> -> vector<2x8x8xf32>
    "tpu.trace_stop"() : () -> ()
    %85 = vector.shape_cast %55 : vector<8x8xf32> to vector<1x8x8xf32>
    %86 = vector.broadcast %85 : vector<1x8x8xf32> to vector<2x8x8xf32>
    %87 = arith.addf %84, %86 : vector<2x8x8xf32>
    %cst_30 = arith.constant dense<0xFF800000> : vector<2x8xf32>
    %88 = vector.multi_reduction <maximumf>, %87, %cst_30 [2] : vector<2x8x8xf32> to vector<2x8xf32>
    %cst_31 = arith.constant 0xFF800000 : f32
    %89 = vector.broadcast %cst_31 : f32 to vector<2x8xf32>
    %90 = arith.maximumf %89, %88 : vector<2x8xf32>
    %91 = vector.shape_cast %90 : vector<2x8xf32> to vector<2x8x1xf32>
    %92 = vector.broadcast %91 : vector<2x8x1xf32> to vector<2x8x8xf32>
    %93 = arith.subf %87, %92 : vector<2x8x8xf32>
    %94 = math.exp %93 : vector<2x8x8xf32>
    %cst_32 = arith.constant dense<0.000000e+00> : vector<2x8xf32>
    %95 = vector.multi_reduction <add>, %94, %cst_32 [2] : vector<2x8x8xf32> to vector<2x8xf32>
    %96 = vector.shape_cast %95 : vector<2x8xf32> to vector<2x8x1xf32>
    %97 = vector.broadcast %96 : vector<2x8x1xf32> to vector<2x8x8xf32>
    %98 = arith.divf %94, %97 : vector<2x8x8xf32>
    %99 = arith.truncf %98 : vector<2x8x8xf32> to vector<2x8x8xbf16>
    %100 = vector.extract_strided_slice %52 {offsets = [0, 0, 8], sizes = [2, 8, 8], strides = [1, 1, 1]} : vector<2x8x32xbf16> to vector<2x8x8xbf16>
    "tpu.trace_start"() <{level = 10 : i32, message = "bqk,bkc->bqc"}> : () -> ()
    %cst_33 = arith.constant dense<0.000000e+00> : vector<2x8x8xf32>
    %101 = tpu.matmul %99, %100, %cst_33 {dimension_numbers = #tpu.dot_dimension_numbers<[2], [1], [1], [2], [0, 0, 0, 1, 1, 2], [0], [0]>} : vector<2x8x8xbf16>, vector<2x8x8xbf16>, vector<2x8x8xf32> -> vector<2x8x8xf32>
    "tpu.trace_stop"() : () -> ()
    %102 = arith.truncf %101 : vector<2x8x8xf32> to vector<2x8x8xbf16>
    %103 = vector.shape_cast %102 : vector<2x8x8xbf16> to vector<16x8xbf16>
    %104 = vector.extract_strided_slice %54 {offsets = [8, 0], sizes = [8, 32], strides = [1, 1]} : vector<32x32xbf16> to vector<8x32xbf16>
    %cst_34 = arith.constant dense<0.000000e+00> : vector<16x32xf32>
    %105 = tpu.matmul %103, %104, %cst_34 {dimension_numbers = #tpu.dot_dimension_numbers<[1], [0], [0], [1], [0, 0, 1, 1], [], []>} : vector<16x8xbf16>, vector<8x32xbf16>, vector<16x32xf32> -> vector<16x32xf32>
    %106 = arith.addf %81, %105 : vector<16x32xf32>
    %107 = vector.extract_strided_slice %46 {offsets = [0, 0, 16], sizes = [2, 8, 8], strides = [1, 1, 1]} : vector<2x8x32xbf16> to vector<2x8x8xbf16>
    %108 = vector.extract_strided_slice %49 {offsets = [0, 0, 16], sizes = [2, 8, 8], strides = [1, 1, 1]} : vector<2x8x32xbf16> to vector<2x8x8xbf16>
    "tpu.trace_start"() <{level = 10 : i32, message = "bqc,bkc->bqk"}> : () -> ()
    %cst_35 = arith.constant dense<0.000000e+00> : vector<2x8x8xf32>
    %109 = tpu.matmul %107, %108, %cst_35 {dimension_numbers = #tpu.dot_dimension_numbers<[2], [2], [1], [1], [0, 0, 0, 1, 1, 1], [0], [0]>} : vector<2x8x8xbf16>, vector<2x8x8xbf16>, vector<2x8x8xf32> -> vector<2x8x8xf32>
    "tpu.trace_stop"() : () -> ()
    %110 = vector.shape_cast %55 : vector<8x8xf32> to vector<1x8x8xf32>
    %111 = vector.broadcast %110 : vector<1x8x8xf32> to vector<2x8x8xf32>
    %112 = arith.addf %109, %111 : vector<2x8x8xf32>
    %cst_36 = arith.constant dense<0xFF800000> : vector<2x8xf32>
    %113 = vector.multi_reduction <maximumf>, %112, %cst_36 [2] : vector<2x8x8xf32> to vector<2x8xf32>
    %cst_37 = arith.constant 0xFF800000 : f32
    %114 = vector.broadcast %cst_37 : f32 to vector<2x8xf32>
    %115 = arith.maximumf %114, %113 : vector<2x8xf32>
    %116 = vector.shape_cast %115 : vector<2x8xf32> to vector<2x8x1xf32>
    %117 = vector.broadcast %116 : vector<2x8x1xf32> to vector<2x8x8xf32>
    %118 = arith.subf %112, %117 : vector<2x8x8xf32>
    %119 = math.exp %118 : vector<2x8x8xf32>
    %cst_38 = arith.constant dense<0.000000e+00> : vector<2x8xf32>
    %120 = vector.multi_reduction <add>, %119, %cst_38 [2] : vector<2x8x8xf32> to vector<2x8xf32>
    %121 = vector.shape_cast %120 : vector<2x8xf32> to vector<2x8x1xf32>
    %122 = vector.broadcast %121 : vector<2x8x1xf32> to vector<2x8x8xf32>
    %123 = arith.divf %119, %122 : vector<2x8x8xf32>
    %124 = arith.truncf %123 : vector<2x8x8xf32> to vector<2x8x8xbf16>
    %125 = vector.extract_strided_slice %52 {offsets = [0, 0, 16], sizes = [2, 8, 8], strides = [1, 1, 1]} : vector<2x8x32xbf16> to vector<2x8x8xbf16>
    "tpu.trace_start"() <{level = 10 : i32, message = "bqk,bkc->bqc"}> : () -> ()
    %cst_39 = arith.constant dense<0.000000e+00> : vector<2x8x8xf32>
    %126 = tpu.matmul %124, %125, %cst_39 {dimension_numbers = #tpu.dot_dimension_numbers<[2], [1], [1], [2], [0, 0, 0, 1, 1, 2], [0], [0]>} : vector<2x8x8xbf16>, vector<2x8x8xbf16>, vector<2x8x8xf32> -> vector<2x8x8xf32>
    "tpu.trace_stop"() : () -> ()
    %127 = arith.truncf %126 : vector<2x8x8xf32> to vector<2x8x8xbf16>
    %128 = vector.shape_cast %127 : vector<2x8x8xbf16> to vector<16x8xbf16>
    %129 = vector.extract_strided_slice %54 {offsets = [16, 0], sizes = [8, 32], strides = [1, 1]} : vector<32x32xbf16> to vector<8x32xbf16>
    %cst_40 = arith.constant dense<0.000000e+00> : vector<16x32xf32>
    %130 = tpu.matmul %128, %129, %cst_40 {dimension_numbers = #tpu.dot_dimension_numbers<[1], [0], [0], [1], [0, 0, 1, 1], [], []>} : vector<16x8xbf16>, vector<8x32xbf16>, vector<16x32xf32> -> vector<16x32xf32>
    %131 = arith.addf %106, %130 : vector<16x32xf32>
    %132 = vector.extract_strided_slice %46 {offsets = [0, 0, 24], sizes = [2, 8, 8], strides = [1, 1, 1]} : vector<2x8x32xbf16> to vector<2x8x8xbf16>
    %133 = vector.extract_strided_slice %49 {offsets = [0, 0, 24], sizes = [2, 8, 8], strides = [1, 1, 1]} : vector<2x8x32xbf16> to vector<2x8x8xbf16>
    "tpu.trace_start"() <{level = 10 : i32, message = "bqc,bkc->bqk"}> : () -> ()
    %cst_41 = arith.constant dense<0.000000e+00> : vector<2x8x8xf32>
    %134 = tpu.matmul %132, %133, %cst_41 {dimension_numbers = #tpu.dot_dimension_numbers<[2], [2], [1], [1], [0, 0, 0, 1, 1, 1], [0], [0]>} : vector<2x8x8xbf16>, vector<2x8x8xbf16>, vector<2x8x8xf32> -> vector<2x8x8xf32>
    "tpu.trace_stop"() : () -> ()
    %135 = vector.shape_cast %55 : vector<8x8xf32> to vector<1x8x8xf32>
    %136 = vector.broadcast %135 : vector<1x8x8xf32> to vector<2x8x8xf32>
    %137 = arith.addf %134, %136 : vector<2x8x8xf32>
    %cst_42 = arith.constant dense<0xFF800000> : vector<2x8xf32>
    %138 = vector.multi_reduction <maximumf>, %137, %cst_42 [2] : vector<2x8x8xf32> to vector<2x8xf32>
    %cst_43 = arith.constant 0xFF800000 : f32
    %139 = vector.broadcast %cst_43 : f32 to vector<2x8xf32>
    %140 = arith.maximumf %139, %138 : vector<2x8xf32>
    %141 = vector.shape_cast %140 : vector<2x8xf32> to vector<2x8x1xf32>
    %142 = vector.broadcast %141 : vector<2x8x1xf32> to vector<2x8x8xf32>
    %143 = arith.subf %137, %142 : vector<2x8x8xf32>
    %144 = math.exp %143 : vector<2x8x8xf32>
    %cst_44 = arith.constant dense<0.000000e+00> : vector<2x8xf32>
    %145 = vector.multi_reduction <add>, %144, %cst_44 [2] : vector<2x8x8xf32> to vector<2x8xf32>
    %146 = vector.shape_cast %145 : vector<2x8xf32> to vector<2x8x1xf32>
    %147 = vector.broadcast %146 : vector<2x8x1xf32> to vector<2x8x8xf32>
    %148 = arith.divf %144, %147 : vector<2x8x8xf32>
    %149 = arith.truncf %148 : vector<2x8x8xf32> to vector<2x8x8xbf16>
    %150 = vector.extract_strided_slice %52 {offsets = [0, 0, 24], sizes = [2, 8, 8], strides = [1, 1, 1]} : vector<2x8x32xbf16> to vector<2x8x8xbf16>
    "tpu.trace_start"() <{level = 10 : i32, message = "bqk,bkc->bqc"}> : () -> ()
    %cst_45 = arith.constant dense<0.000000e+00> : vector<2x8x8xf32>
    %151 = tpu.matmul %149, %150, %cst_45 {dimension_numbers = #tpu.dot_dimension_numbers<[2], [1], [1], [2], [0, 0, 0, 1, 1, 2], [0], [0]>} : vector<2x8x8xbf16>, vector<2x8x8xbf16>, vector<2x8x8xf32> -> vector<2x8x8xf32>
    "tpu.trace_stop"() : () -> ()
    %152 = arith.truncf %151 : vector<2x8x8xf32> to vector<2x8x8xbf16>
    %153 = vector.shape_cast %152 : vector<2x8x8xbf16> to vector<16x8xbf16>
    %154 = vector.extract_strided_slice %54 {offsets = [24, 0], sizes = [8, 32], strides = [1, 1]} : vector<32x32xbf16> to vector<8x32xbf16>
    %cst_46 = arith.constant dense<0.000000e+00> : vector<16x32xf32>
    %155 = tpu.matmul %153, %154, %cst_46 {dimension_numbers = #tpu.dot_dimension_numbers<[1], [0], [0], [1], [0, 0, 1, 1], [], []>} : vector<16x8xbf16>, vector<8x32xbf16>, vector<16x32xf32> -> vector<16x32xf32>
    %156 = arith.addf %131, %155 : vector<16x32xf32>
    %157 = arith.addf %3, %156 : vector<16x32xf32>
    %158 = vector.broadcast %10 : vector<1x32xf32> to vector<16x32xf32>
    %159 = arith.addf %157, %158 : vector<16x32xf32>
    %cst_47 = arith.constant dense<0.000000e+00> : vector<16xf32>
    %160 = vector.multi_reduction <add>, %159, %cst_47 [1] : vector<16x32xf32> to vector<16xf32>
    %161 = vector.shape_cast %160 : vector<16xf32> to vector<16x1xf32>
    %cst_48 = arith.constant 3.200000e+01 : f32
    %162 = vector.broadcast %cst_48 : f32 to vector<16x1xf32>
    %163 = arith.divf %161, %162 : vector<16x1xf32>
    %164 = vector.broadcast %163 : vector<16x1xf32> to vector<16x32xf32>
    %165 = arith.subf %159, %164 : vector<16x32xf32>
    %166 = arith.mulf %165, %165 : vector<16x32xf32>
    %cst_49 = arith.constant dense<0.000000e+00> : vector<16xf32>
    %167 = vector.multi_reduction <add>, %166, %cst_49 [1] : vector<16x32xf32> to vector<16xf32>
    %168 = vector.shape_cast %167 : vector<16xf32> to vector<16x1xf32>
    %cst_50 = arith.constant 3.200000e+01 : f32
    %169 = vector.broadcast %cst_50 : f32 to vector<16x1xf32>
    %170 = arith.divf %168, %169 : vector<16x1xf32>
    %171 = vector.broadcast %163 : vector<16x1xf32> to vector<16x32xf32>
    %172 = arith.subf %159, %171 : vector<16x32xf32>
    %cst_51 = arith.constant 9.99999974E-6 : f32
    %173 = vector.broadcast %cst_51 : f32 to vector<16x1xf32>
    %174 = arith.addf %170, %173 : vector<16x1xf32>
    %175 = math.rsqrt %174 : vector<16x1xf32>
    %176 = vector.broadcast %175 : vector<16x1xf32> to vector<16x32xf32>
    %177 = arith.mulf %172, %176 : vector<16x32xf32>
    %178 = vector.broadcast %8 : vector<1x32xf32> to vector<16x32xf32>
    %179 = arith.mulf %177, %178 : vector<16x32xf32>
    %180 = vector.broadcast %9 : vector<1x32xf32> to vector<16x32xf32>
    %181 = arith.addf %179, %180 : vector<16x32xf32>
    %182 = arith.truncf %181 : vector<16x32xf32> to vector<16x32xbf16>
    %c0_52 = arith.constant 0 : index
    %c0_53 = arith.constant 0 : index
    %c0_54 = arith.constant 0 : index
    %183 = vector.load %arg10[%c0_52, %c0_53, %c0_54] : memref<1x32x128xbf16, #tpu.memory_space<vmem>>, vector<1x32x128xbf16>
    %184 = vector.shape_cast %183 : vector<1x32x128xbf16> to vector<32x128xbf16>
    %cst_55 = arith.constant dense<0.000000e+00> : vector<16x128xf32>
    %185 = tpu.matmul %182, %184, %cst_55 {dimension_numbers = #tpu.dot_dimension_numbers<[1], [0], [0], [1], [0, 0, 1, 1], [], []>} : vector<16x32xbf16>, vector<32x128xbf16>, vector<16x128xf32> -> vector<16x128xf32>
    %c0_56 = arith.constant 0 : index
    %c0_57 = arith.constant 0 : index
    %c0_58 = arith.constant 0 : index
    %186 = vector.load %arg11[%c0_56, %c0_57, %c0_58] : memref<1x1x128xf32, #tpu.memory_space<vmem>>, vector<1x1x128xf32>
    %187 = vector.shape_cast %186 : vector<1x1x128xf32> to vector<1x128xf32>
    %188 = vector.broadcast %187 : vector<1x128xf32> to vector<16x128xf32>
    %189 = arith.addf %185, %188 : vector<16x128xf32>
    %cst_59 = arith.constant 1.702000e+00 : f32
    %190 = vector.broadcast %cst_59 : f32 to vector<16x128xf32>
    %191 = arith.mulf %190, %189 : vector<16x128xf32>
    %192 = arith.negf %191 : vector<16x128xf32>
    %193 = math.exp %192 : vector<16x128xf32>
    %cst_60 = arith.constant 1.000000e+00 : f32
    %194 = vector.broadcast %cst_60 : f32 to vector<16x128xf32>
    %195 = arith.addf %194, %193 : vector<16x128xf32>
    %196 = arith.divf %194, %195 : vector<16x128xf32>
    %197 = arith.mulf %189, %196 : vector<16x128xf32>
    %198 = arith.truncf %197 : vector<16x128xf32> to vector<16x128xbf16>
    %c0_61 = arith.constant 0 : index
    %c0_62 = arith.constant 0 : index
    %c0_63 = arith.constant 0 : index
    %199 = vector.load %arg12[%c0_61, %c0_62, %c0_63] : memref<1x128x32xbf16, #tpu.memory_space<vmem>>, vector<1x128x32xbf16>
    %200 = vector.shape_cast %199 : vector<1x128x32xbf16> to vector<128x32xbf16>
    %cst_64 = arith.constant dense<0.000000e+00> : vector<16x32xf32>
    %201 = tpu.matmul %198, %200, %cst_64 {dimension_numbers = #tpu.dot_dimension_numbers<[1], [0], [0], [1], [0, 0, 1, 1], [], []>} : vector<16x128xbf16>, vector<128x32xbf16>, vector<16x32xf32> -> vector<16x32xf32>
    %202 = vector.broadcast %11 : vector<1x32xf32> to vector<16x32xf32>
    %203 = arith.addf %201, %202 : vector<16x32xf32>
    %204 = arith.addf %159, %203 : vector<16x32xf32>
    %c0_65 = arith.constant 0 : index
    %c0_66 = arith.constant 0 : index
    %205 = vector.load %arg16[%c0_65, %c0_66] : memref<16x32xf32, #tpu.memory_space<vmem>>, vector<16x32xf32>
    tpu.vector_store %arg16[%c0_65, %c0_66], %204 {strides = array<i32>} : memref<16x32xf32, #tpu.memory_space<vmem>>, vector<16x32xf32>,
    %c1_i32 = arith.constant 1 : i32
    %206 = arith.cmpi eq, %arg1, %c1_i32 : i32
    %207 = arith.extui %206 : i1 to i32
    %c0_i32_67 = arith.constant 0 : i32
    %208 = arith.cmpi ne, %207, %c0_i32_67 : i32
    scf.if %208 {
      %c0_68 = arith.constant 0 : index
      %c0_69 = arith.constant 0 : index
      %209 = vector.load %arg13[%c0_68, %c0_69] : memref<2x32xf32, #tpu.memory_space<vmem>>, vector<2x32xf32>
      %c2_i32 = arith.constant 2 : i32
      %210 = arith.muli %arg0, %c2_i32 : i32
      %c0_i32_70 = arith.constant 0 : i32
      %211 = arith.addi %210, %c0_i32_70 : i32
      %212 = arith.index_cast %211 : i32 to index
      %213 = memref.load %arg2[%212] : memref<2xi32, #tpu.memory_space<smem>>
      %c0_i32_71 = arith.constant 0 : i32
      %214 = arith.addi %c0_i32_71, %213 : i32
      %215 = arith.index_cast %214 : i32 to index
      %c0_72 = arith.constant 0 : index
      %216 = vector.load %arg16[%215, %c0_72] : memref<16x32xf32, #tpu.memory_space<vmem>>, vector<1x32xf32>
      %c2_i32_73 = arith.constant 2 : i32
      %217 = arith.muli %arg0, %c2_i32_73 : i32
      %c1_i32_74 = arith.constant 1 : i32
      %218 = arith.addi %217, %c1_i32_74 : i32
      %219 = arith.index_cast %218 : i32 to index
      %220 = memref.load %arg2[%219] : memref<2xi32, #tpu.memory_space<smem>>
      %c8_i32 = arith.constant 8 : i32
      %221 = arith.addi %c8_i32, %220 : i32
      %222 = arith.index_cast %221 : i32 to index
      %c0_75 = arith.constant 0 : index
      %223 = vector.load %arg16[%222, %c0_75] : memref<16x32xf32, #tpu.memory_space<vmem>>, vector<1x32xf32>
      %224 = tpu.concatenate %216, %223 in 0 : vector<1x32xf32>, vector<1x32xf32> -> vector<2x32xf32>
      %225 = vector.extract_strided_slice %209 {offsets = [0, 0], sizes = [1, 32], strides = [1, 1]} : vector<2x32xf32> to vector<1x32xf32>
      %226 = vector.extract_strided_slice %209 {offsets = [1, 0], sizes = [1, 32], strides = [1, 1]} : vector<2x32xf32> to vector<1x32xf32>
      %cst_76 = arith.constant dense<0.000000e+00> : vector<2xf32>
      %227 = vector.multi_reduction <add>, %224, %cst_76 [1] : vector<2x32xf32> to vector<2xf32>
      %228 = vector.shape_cast %227 : vector<2xf32> to vector<2x1xf32>
      %cst_77 = arith.constant 3.200000e+01 : f32
      %229 = vector.broadcast %cst_77 : f32 to vector<2x1xf32>
      %230 = arith.divf %228, %229 : vector<2x1xf32>
      %231 = vector.broadcast %230 : vector<2x1xf32> to vector<2x32xf32>
      %232 = arith.subf %224, %231 : vector<2x32xf32>
      %233 = arith.mulf %232, %232 : vector<2x32xf32>
      %cst_78 = arith.constant dense<0.000000e+00> : vector<2xf32>
      %234 = vector.multi_reduction <add>, %233, %cst_78 [1] : vector<2x32xf32> to vector<2xf32>
      %235 = vector.shape_cast %234 : vector<2xf32> to vector<2x1xf32>
      %cst_79 = arith.constant 3.200000e+01 : f32
      %236 = vector.broadcast %cst_79 : f32 to vector<2x1xf32>
      %237 = arith.divf %235, %236 : vector<2x1xf32>
      %238 = vector.broadcast %230 : vector<2x1xf32> to vector<2x32xf32>
      %239 = arith.subf %224, %238 : vector<2x32xf32>
      %cst_80 = arith.constant 9.99999974E-6 : f32
      %240 = vector.broadcast %cst_80 : f32 to vector<2x1xf32>
      %241 = arith.addf %237, %240 : vector<2x1xf32>
      %242 = math.rsqrt %241 : vector<2x1xf32>
      %243 = vector.broadcast %242 : vector<2x1xf32> to vector<2x32xf32>
      %244 = arith.mulf %239, %243 : vector<2x32xf32>
      %245 = vector.broadcast %225 : vector<1x32xf32> to vector<2x32xf32>
      %246 = arith.mulf %244, %245 : vector<2x32xf32>
      %247 = vector.broadcast %226 : vector<1x32xf32> to vector<2x32xf32>
      %248 = arith.addf %246, %247 : vector<2x32xf32>
      %249 = arith.truncf %248 : vector<2x32xf32> to vector<2x32xbf16>
      %c0_81 = arith.constant 0 : index
      %c0_82 = arith.constant 0 : index
      %250 = vector.load %arg14[%c0_81, %c0_82] : memref<32x16xbf16, #tpu.memory_space<vmem>>, vector<32x16xbf16>
      %cst_83 = arith.constant dense<0.000000e+00> : vector<2x16xf32>
      %251 = tpu.matmul %249, %250, %cst_83 {dimension_numbers = #tpu.dot_dimension_numbers<[1], [0], [0], [1], [0, 0, 1, 1], [], []>} : vector<2x32xbf16>, vector<32x16xbf16>, vector<2x16xf32> -> vector<2x16xf32>
      %c0_84 = arith.constant 0 : index
      %c0_85 = arith.constant 0 : index
      %252 = vector.load %arg15[%c0_84, %c0_85] : memref<2x16xf32, #tpu.memory_space<vmem>>, vector<2x16xf32>
      tpu.vector_store %arg15[%c0_84, %c0_85], %251 {strides = array<i32>} : memref<2x16xf32, #tpu.memory_space<vmem>>, vector<2x16xf32>,
    } else {
    }
    return
  }
  func.func @transform_0(%arg0: i32, %arg1: i32, %arg2: memref<2xi32, #tpu.memory_space<smem>>) -> (i32, i32, i32) {
    %c0_i32 = arith.constant 0 : i32
    %c0_i32_0 = arith.constant 0 : i32
    %c0_i32_1 = arith.constant 0 : i32
    return %arg0, %c0_i32, %c0_i32_0 : i32, i32, i32
  }
  func.func @transform_1(%arg0: i32, %arg1: i32, %arg2: memref<2xi32, #tpu.memory_space<smem>>) -> (i32, i32) {
    %c0_i32 = arith.constant 0 : i32
    %c0_i32_0 = arith.constant 0 : i32
    %c0_i32_1 = arith.constant 0 : i32
    return %c0_i32, %c0_i32_0 : i32, i32
  }
  func.func @transform_2(%arg0: i32, %arg1: i32, %arg2: memref<2xi32, #tpu.memory_space<smem>>) -> (i32, i32) {
    %c0_i32 = arith.constant 0 : i32
    %c0_i32_0 = arith.constant 0 : i32
    %c0_i32_1 = arith.constant 0 : i32
    return %c0_i32, %c0_i32_0 : i32, i32
  }
  func.func @transform_3(%arg0: i32, %arg1: i32, %arg2: memref<2xi32, #tpu.memory_space<smem>>) -> (i32, i32, i32) {
    %c0_i32 = arith.constant 0 : i32
    %c0_i32_0 = arith.constant 0 : i32
    %c0_i32_1 = arith.constant 0 : i32
    return %arg1, %c0_i32, %c0_i32_0 : i32, i32, i32
  }
  func.func @transform_4(%arg0: i32, %arg1: i32, %arg2: memref<2xi32, #tpu.memory_space<smem>>) -> (i32, i32, i32) {
    %c0_i32 = arith.constant 0 : i32
    %c0_i32_0 = arith.constant 0 : i32
    %c0_i32_1 = arith.constant 0 : i32
    return %arg1, %c0_i32, %c0_i32_0 : i32, i32, i32
  }
  func.func @transform_5(%arg0: i32, %arg1: i32, %arg2: memref<2xi32, #tpu.memory_space<smem>>) -> (i32, i32, i32) {
    %c0_i32 = arith.constant 0 : i32
    %c0_i32_0 = arith.constant 0 : i32
    %c0_i32_1 = arith.constant 0 : i32
    return %arg1, %c0_i32, %c0_i32_0 : i32, i32, i32
  }
  func.func @transform_6(%arg0: i32, %arg1: i32, %arg2: memref<2xi32, #tpu.memory_space<smem>>) -> (i32, i32, i32) {
    %c0_i32 = arith.constant 0 : i32
    %c0_i32_0 = arith.constant 0 : i32
    %c0_i32_1 = arith.constant 0 : i32
    return %arg1, %c0_i32, %c0_i32_0 : i32, i32, i32
  }
  func.func @transform_7(%arg0: i32, %arg1: i32, %arg2: memref<2xi32, #tpu.memory_space<smem>>) -> (i32, i32, i32) {
    %c0_i32 = arith.constant 0 : i32
    %c0_i32_0 = arith.constant 0 : i32
    %c0_i32_1 = arith.constant 0 : i32
    return %arg1, %c0_i32, %c0_i32_0 : i32, i32, i32
  }
  func.func @transform_8(%arg0: i32, %arg1: i32, %arg2: memref<2xi32, #tpu.memory_space<smem>>) -> (i32, i32, i32) {
    %c0_i32 = arith.constant 0 : i32
    %c0_i32_0 = arith.constant 0 : i32
    %c0_i32_1 = arith.constant 0 : i32
    return %arg1, %c0_i32, %c0_i32_0 : i32, i32, i32
  }
  func.func @transform_9(%arg0: i32, %arg1: i32, %arg2: memref<2xi32, #tpu.memory_space<smem>>) -> (i32, i32, i32) {
    %c0_i32 = arith.constant 0 : i32
    %c0_i32_0 = arith.constant 0 : i32
    %c0_i32_1 = arith.constant 0 : i32
    return %arg1, %c0_i32, %c0_i32_0 : i32, i32, i32
  }
  func.func @transform_10(%arg0: i32, %arg1: i32, %arg2: memref<2xi32, #tpu.memory_space<smem>>) -> (i32, i32) {
    %c0_i32 = arith.constant 0 : i32
    %c0_i32_0 = arith.constant 0 : i32
    %c0_i32_1 = arith.constant 0 : i32
    return %c0_i32, %c0_i32_0 : i32, i32
  }
  func.func @transform_11(%arg0: i32, %arg1: i32, %arg2: memref<2xi32, #tpu.memory_space<smem>>) -> (i32, i32) {
    %c0_i32 = arith.constant 0 : i32
    %c0_i32_0 = arith.constant 0 : i32
    %c0_i32_1 = arith.constant 0 : i32
    return %c0_i32, %c0_i32_0 : i32, i32
  }
  func.func @transform_12(%arg0: i32, %arg1: i32, %arg2: memref<2xi32, #tpu.memory_space<smem>>) -> (i32, i32) {
    %c0_i32 = arith.constant 0 : i32
    %c0_i32_0 = arith.constant 0 : i32
    return %arg0, %c0_i32 : i32, i32
  }
}

</mosaic_0001>

<llo_original>
// kernel: tpu_custom_call.1
$region0: #{tpu_custom_call.1}
  #allocation0 [shape = 'u32[]', space=smem, size = 0x4, offset = 0x4, fixed_abs, tag = 'smem constant byte address 0x4 - core index']
  #allocation1 [shape = 'u32[72,128]{1,0:T(1,128)}', space=vmem, size = 0x9000, scoped, tag = 'internal scratch']
  #allocation2 [shape = 'f32[16,32]{1,0:T(8,128)}', space=vmem, size = 0x2000, scoped, tag = 'scratch operand']
  #allocation3 [shape = 's32[1]{0}', space=sflag, size = 0x4, scoped, tag = 'scoped memory for tpu_custom_call.1']
  #allocation4 [shape = 'u8[512]{0}', space=smem, size = 0x200, scoped, tag = 'prefetched SMEM operand 0']
  %s0 = inlined_call_operand.vmem [shape: s32[2], index: 0, kind: input, shape index: {}]
  %s1 = inlined_call_operand.vmem [shape: f32[2,8,32], index: 1, kind: input, shape index: {}]
  %s2 = inlined_call_operand.vmem [shape: f32[8,32], index: 2, kind: input, shape index: {}]
  %s3 = inlined_call_operand.vmem [shape: f32[8,8], index: 3, kind: input, shape index: {}]
  %s4 = inlined_call_operand.vmem [shape: bf16[2,32,96], index: 4, kind: input, shape index: {}]
  %s5 = inlined_call_operand.vmem [shape: f32[2,1,96], index: 5, kind: input, shape index: {}]
  %s6 = inlined_call_operand.vmem [shape: bf16[2,32,32], index: 6, kind: input, shape index: {}]
  %s7 = inlined_call_operand.vmem [shape: f32[2,6,32], index: 7, kind: input, shape index: {}]
  %s8 = inlined_call_operand.vmem [shape: bf16[2,32,128], index: 8, kind: input, shape index: {}]
  %s9 = inlined_call_operand.vmem [shape: f32[2,1,128], index: 9, kind: input, shape index: {}]
  %s10 = inlined_call_operand.vmem [shape: bf16[2,128,32], index: 10, kind: input, shape index: {}]
  %s11 = inlined_call_operand.vmem [shape: f32[2,32], index: 11, kind: input, shape index: {}]
  %s12 = inlined_call_operand.vmem [shape: bf16[32,16], index: 12, kind: input, shape index: {}]
  %s13 = inlined_call_operand.hbm [shape: f32[2,16], index: 13, kind: output, shape index: {}]
  %s14 = sld [smem:[#allocation0]]
  $region89: #{tpu_custom_call.1} parent=0
    _
  %s16 = ssub.s32 1, %s14
  %s17 = scalar_select 0, %s16, %s14
  %s19 = sshll.u32 %s0, 4
  %s20 = int_to_ptr.vmem [resolvable:$true] %s19
  %22 = dma.vmem_to_smem %s20, 16, [#allocation4], [#allocation3]
  %24 = dma.done [#allocation3], 16
  %25 = sfence
  $region1: #{tpu_custom_call.1} parent=0
    #allocation5 [shape = 'u8[1024]{0}', space=vmem, size = 0x400, scoped, tag = 'output window, operand 0, single buffered']
    #allocation6 [shape = 's32[2]{0}', space=sflag, size = 0x8, scoped, tag = 'scoped memory for tpu_custom_call.1']
    %26 = vsyncpa [#allocation6], 0
    loop: start=0, step=1, limit=4
    $region2: #{tpu_custom_call.1} parent=1 // loop_pre_header
      _
    $region3: #{tpu_custom_call.1} parent=1 // loop_header
      %s28 = sphi 0, %s32
      %p29 = scmp.ge.s32.totalorder %s28, 4
      %s35 = sphi 0, %s47
      %s36 = sphi 0, %s43
      %s37 = sphi 0, %s35
      %s38 = sphi 0, %s36
      %s39 = sphi 0, %s37
      %s40 = sphi 0, %s38
      %s50 = sphi 0, %s52
      %s53 = sphi 0, %s50
      %s54 = sphi 0, %s53
      %s70 = sphi 0, %s54
      %s74 = sphi 0, %s74
      %s76 = sphi 0, %s74
      %s77 = sphi 0, %s76
      %s91 = sphi 0, %s77
      %s95 = sphi 0, %s95
      %s97 = sphi 0, %s95
      %s98 = sphi 0, %s97
      %s112 = sphi 0, %s98
      %s118 = sphi 0, %s120
      %s121 = sphi 0, %s118
      %s122 = sphi 0, %s121
      %s138 = sphi 0, %s122
      %s144 = sphi 0, %s146
      %s147 = sphi 0, %s144
      %s148 = sphi 0, %s147
      %s164 = sphi 0, %s148
      %s170 = sphi 0, %s172
      %s173 = sphi 0, %s170
      %s174 = sphi 0, %s173
      %s190 = sphi 0, %s174
      %s196 = sphi 0, %s198
      %s199 = sphi 0, %s196
      %s200 = sphi 0, %s199
      %s216 = sphi 0, %s200
      %s222 = sphi 0, %s224
      %s225 = sphi 0, %s222
      %s226 = sphi 0, %s225
      %s242 = sphi 0, %s226
      %s248 = sphi 0, %s250
      %s251 = sphi 0, %s248
      %s252 = sphi 0, %s251
      %s268 = sphi 0, %s252
      %s274 = sphi 0, %s276
      %s277 = sphi 0, %s274
      %s278 = sphi 0, %s277
      %s294 = sphi 0, %s278
      %s298 = sphi 0, %s298
      %s300 = sphi 0, %s298
      %s301 = sphi 0, %s300
      %s315 = sphi 0, %s301
      %s319 = sphi 0, %s319
      %s321 = sphi 0, %s319
      %s322 = sphi 0, %s321
      %s336 = sphi 0, %s322
      %s342 = sphi 0, %s344
      %s345 = sphi 0, %s342
      %s346 = sphi 0, %s345
      %s362 = sphi 0, %s346
    $region4: #{tpu_custom_call.1} parent=1 // loop_header_branch
      %31 = sbr.rel (%p29) target = $region8
    $region5: #{tpu_custom_call.1} parent=1 // loop_body
      %s33 = ssub.s32 %s28, 1
      %s34 = ssub.s32 %s28, 2
      %s41 = sadd.s32 1, %s36
      %p42 = scmp.ge.s32.totalorder %s41, 2
      %s43 = scalar_select %p42, 0, %s41
      %s44 = sadd.s32 1, %s35
      %s45 = scalar_select %p42, %s44, %s35
      %p46 = scmp.ge.s32.totalorder %s45, 1
      %s47 = scalar_select %p46, 0, %s45
      %s48 = ssub.s32 %s35, %s47
      %p49 = scmp.eq.s32.totalorder %s48, 0
      %s51 = sadd.s32 %s50, 1
      %s52 = scalar_select %p49, %s50, %s51
      %p55 = pneg %p49
      %p56 = scmp.eq.s32.totalorder %s28, 1
      %p57 = por %p55, %p56
      %p58 = scmp.ne.s32.totalorder %s50, %s53
      %p59 = scmp.eq.s32.totalorder %s28, 0
      %p60 = por %p58, %p59
      %p61 = scmp.ne.s32.totalorder %s50, %s53
      %p62 = scmp.eq.s32.totalorder %s33, 1
      %p63 = por %p61, %p62
      %p64 = scmp.ne.s32.totalorder %s53, %s54
      %p65 = scmp.eq.s32.totalorder %s33, 0
      %p66 = por %p64, %p65
      %p67 = scmp.ne.s32.totalorder %s53, %s54
      %p68 = scmp.eq.s32.totalorder %s34, 1
      %p69 = por %p67, %p68
      %p71 = scmp.ne.s32.totalorder %s54, %s70
      %p72 = scmp.eq.s32.totalorder %s34, 0
      %p73 = por %p71, %p72
      %s75 = sadd.s32 %s74, 1
      %p78 = scmp.eq.s32.totalorder %s28, 1
      %p79 = scmp.ne.s32.totalorder %s74, %s76
      %p80 = scmp.eq.s32.totalorder %s28, 0
      %p81 = por %p79, %p80
      %p82 = scmp.ne.s32.totalorder %s74, %s76
      %p83 = scmp.eq.s32.totalorder %s33, 1
      %p84 = por %p82, %p83
      %p85 = scmp.ne.s32.totalorder %s76, %s77
      %p86 = scmp.eq.s32.totalorder %s33, 0
      %p87 = por %p85, %p86
      %p88 = scmp.ne.s32.totalorder %s76, %s77
      %p89 = scmp.eq.s32.totalorder %s34, 1
      %p90 = por %p88, %p89
      %p92 = scmp.ne.s32.totalorder %s77, %s91
      %p93 = scmp.eq.s32.totalorder %s34, 0
      %p94 = por %p92, %p93
      %s96 = sadd.s32 %s95, 1
      %p99 = scmp.eq.s32.totalorder %s28, 1
      %p100 = scmp.ne.s32.totalorder %s95, %s97
      %p101 = scmp.eq.s32.totalorder %s28, 0
      %p102 = por %p100, %p101
      %p103 = scmp.ne.s32.totalorder %s95, %s97
      %p104 = scmp.eq.s32.totalorder %s33, 1
      %p105 = por %p103, %p104
      %p106 = scmp.ne.s32.totalorder %s97, %s98
      %p107 = scmp.eq.s32.totalorder %s33, 0
      %p108 = por %p106, %p107
      %p109 = scmp.ne.s32.totalorder %s97, %s98
      %p110 = scmp.eq.s32.totalorder %s34, 1
      %p111 = por %p109, %p110
      %p113 = scmp.ne.s32.totalorder %s98, %s112
      %p114 = scmp.eq.s32.totalorder %s34, 0
      %p115 = por %p113, %p114
      %s116 = ssub.s32 %s36, %s43
      %p117 = scmp.eq.s32.totalorder %s116, 0
      %s119 = sadd.s32 %s118, 1
      %s120 = scalar_select %p117, %s118, %s119
      %p123 = pneg %p117
      %p124 = scmp.eq.s32.totalorder %s28, 1
      %p125 = por %p123, %p124
      %p126 = scmp.ne.s32.totalorder %s118, %s121
      %p127 = scmp.eq.s32.totalorder %s28, 0
      %p128 = por %p126, %p127
      %p129 = scmp.ne.s32.totalorder %s118, %s121
      %p130 = scmp.eq.s32.totalorder %s33, 1
      %p131 = por %p129, %p130
      %p132 = scmp.ne.s32.totalorder %s121, %s122
      %p133 = scmp.eq.s32.totalorder %s33, 0
      %p134 = por %p132, %p133
      %p135 = scmp.ne.s32.totalorder %s121, %s122
      %p136 = scmp.eq.s32.totalorder %s34, 1
      %p137 = por %p135, %p136
      %p139 = scmp.ne.s32.totalorder %s122, %s138
      %p140 = scmp.eq.s32.totalorder %s34, 0
      %p141 = por %p139, %p140
      %s142 = ssub.s32 %s36, %s43
      %p143 = scmp.eq.s32.totalorder %s142, 0
      %s145 = sadd.s32 %s144, 1
      %s146 = scalar_select %p143, %s144, %s145
      %p149 = pneg %p143
      %p150 = scmp.eq.s32.totalorder %s28, 1
      %p151 = por %p149, %p150
      %p152 = scmp.ne.s32.totalorder %s144, %s147
      %p153 = scmp.eq.s32.totalorder %s28, 0
      %p154 = por %p152, %p153
      %p155 = scmp.ne.s32.totalorder %s144, %s147
      %p156 = scmp.eq.s32.totalorder %s33, 1
      %p157 = por %p155, %p156
      %p158 = scmp.ne.s32.totalorder %s147, %s148
      %p159 = scmp.eq.s32.totalorder %s33, 0
      %p160 = por %p158, %p159
      %p161 = scmp.ne.s32.totalorder %s147, %s148
      %p162 = scmp.eq.s32.totalorder %s34, 1
      %p163 = por %p161, %p162
      %p165 = scmp.ne.s32.totalorder %s148, %s164
      %p166 = scmp.eq.s32.totalorder %s34, 0
      %p167 = por %p165, %p166
      %s168 = ssub.s32 %s36, %s43
      %p169 = scmp.eq.s32.totalorder %s168, 0
      %s171 = sadd.s32 %s170, 1
      %s172 = scalar_select %p169, %s170, %s171
      %p175 = pneg %p169
      %p176 = scmp.eq.s32.totalorder %s28, 1
      %p177 = por %p175, %p176
      %p178 = scmp.ne.s32.totalorder %s170, %s173
      %p179 = scmp.eq.s32.totalorder %s28, 0
      %p180 = por %p178, %p179
      %p181 = scmp.ne.s32.totalorder %s170, %s173
      %p182 = scmp.eq.s32.totalorder %s33, 1
      %p183 = por %p181, %p182
      %p184 = scmp.ne.s32.totalorder %s173, %s174
      %p185 = scmp.eq.s32.totalorder %s33, 0
      %p186 = por %p184, %p185
      %p187 = scmp.ne.s32.totalorder %s173, %s174
      %p188 = scmp.eq.s32.totalorder %s34, 1
      %p189 = por %p187, %p188
      %p191 = scmp.ne.s32.totalorder %s174, %s190
      %p192 = scmp.eq.s32.totalorder %s34, 0
      %p193 = por %p191, %p192
      %s194 = ssub.s32 %s36, %s43
      %p195 = scmp.eq.s32.totalorder %s194, 0
      %s197 = sadd.s32 %s196, 1
      %s198 = scalar_select %p195, %s196, %s197
      %p201 = pneg %p195
      %p202 = scmp.eq.s32.totalorder %s28, 1
      %p203 = por %p201, %p202
      %p204 = scmp.ne.s32.totalorder %s196, %s199
      %p205 = scmp.eq.s32.totalorder %s28, 0
      %p206 = por %p204, %p205
      %p207 = scmp.ne.s32.totalorder %s196, %s199
      %p208 = scmp.eq.s32.totalorder %s33, 1
      %p209 = por %p207, %p208
      %p210 = scmp.ne.s32.totalorder %s199, %s200
      %p211 = scmp.eq.s32.totalorder %s33, 0
      %p212 = por %p210, %p211
      %p213 = scmp.ne.s32.totalorder %s199, %s200
      %p214 = scmp.eq.s32.totalorder %s34, 1
      %p215 = por %p213, %p214
      %p217 = scmp.ne.s32.totalorder %s200, %s216
      %p218 = scmp.eq.s32.totalorder %s34, 0
      %p219 = por %p217, %p218
      %s220 = ssub.s32 %s36, %s43
      %p221 = scmp.eq.s32.totalorder %s220, 0
      %s223 = sadd.s32 %s222, 1
      %s224 = scalar_select %p221, %s222, %s223
      %p227 = pneg %p221
      %p228 = scmp.eq.s32.totalorder %s28, 1
      %p229 = por %p227, %p228
      %p230 = scmp.ne.s32.totalorder %s222, %s225
      %p231 = scmp.eq.s32.totalorder %s28, 0
      %p232 = por %p230, %p231
      %p233 = scmp.ne.s32.totalorder %s222, %s225
      %p234 = scmp.eq.s32.totalorder %s33, 1
      %p235 = por %p233, %p234
      %p236 = scmp.ne.s32.totalorder %s225, %s226
      %p237 = scmp.eq.s32.totalorder %s33, 0
      %p238 = por %p236, %p237
      %p239 = scmp.ne.s32.totalorder %s225, %s226
      %p240 = scmp.eq.s32.totalorder %s34, 1
      %p241 = por %p239, %p240
      %p243 = scmp.ne.s32.totalorder %s226, %s242
      %p244 = scmp.eq.s32.totalorder %s34, 0
      %p245 = por %p243, %p244
      %s246 = ssub.s32 %s36, %s43
      %p247 = scmp.eq.s32.totalorder %s246, 0
      %s249 = sadd.s32 %s248, 1
      %s250 = scalar_select %p247, %s248, %s249
      %p253 = pneg %p247
      %p254 = scmp.eq.s32.totalorder %s28, 1
      %p255 = por %p253, %p254
      %p256 = scmp.ne.s32.totalorder %s248, %s251
      %p257 = scmp.eq.s32.totalorder %s28, 0
      %p258 = por %p256, %p257
      %p259 = scmp.ne.s32.totalorder %s248, %s251
      %p260 = scmp.eq.s32.totalorder %s33, 1
      %p261 = por %p259, %p260
      %p262 = scmp.ne.s32.totalorder %s251, %s252
      %p263 = scmp.eq.s32.totalorder %s33, 0
      %p264 = por %p262, %p263
      %p265 = scmp.ne.s32.totalorder %s251, %s252
      %p266 = scmp.eq.s32.totalorder %s34, 1
      %p267 = por %p265, %p266
      %p269 = scmp.ne.s32.totalorder %s252, %s268
      %p270 = scmp.eq.s32.totalorder %s34, 0
      %p271 = por %p269, %p270
      %s272 = ssub.s32 %s36, %s43
      %p273 = scmp.eq.s32.totalorder %s272, 0
      %s275 = sadd.s32 %s274, 1
      %s276 = scalar_select %p273, %s274, %s275
      %p279 = pneg %p273
      %p280 = scmp.eq.s32.totalorder %s28, 1
      %p281 = por %p279, %p280
      %p282 = scmp.ne.s32.totalorder %s274, %s277
      %p283 = scmp.eq.s32.totalorder %s28, 0
      %p284 = por %p282, %p283
      %p285 = scmp.ne.s32.totalorder %s274, %s277
      %p286 = scmp.eq.s32.totalorder %s33, 1
      %p287 = por %p285, %p286
      %p288 = scmp.ne.s32.totalorder %s277, %s278
      %p289 = scmp.eq.s32.totalorder %s33, 0
      %p290 = por %p288, %p289
      %p291 = scmp.ne.s32.totalorder %s277, %s278
      %p292 = scmp.eq.s32.totalorder %s34, 1
      %p293 = por %p291, %p292
      %p295 = scmp.ne.s32.totalorder %s278, %s294
      %p296 = scmp.eq.s32.totalorder %s34, 0
      %p297 = por %p295, %p296
      %s299 = sadd.s32 %s298, 1
      %p302 = scmp.eq.s32.totalorder %s28, 1
      %p303 = scmp.ne.s32.totalorder %s298, %s300
      %p304 = scmp.eq.s32.totalorder %s28, 0
      %p305 = por %p303, %p304
      %p306 = scmp.ne.s32.totalorder %s298, %s300
      %p307 = scmp.eq.s32.totalorder %s33, 1
      %p308 = por %p306, %p307
      %p309 = scmp.ne.s32.totalorder %s300, %s301
      %p310 = scmp.eq.s32.totalorder %s33, 0
      %p311 = por %p309, %p310
      %p312 = scmp.ne.s32.totalorder %s300, %s301
      %p313 = scmp.eq.s32.totalorder %s34, 1
      %p314 = por %p312, %p313
      %p316 = scmp.ne.s32.totalorder %s301, %s315
      %p317 = scmp.eq.s32.totalorder %s34, 0
      %p318 = por %p316, %p317
      %s320 = sadd.s32 %s319, 1
      %p323 = scmp.eq.s32.totalorder %s28, 1
      %p324 = scmp.ne.s32.totalorder %s319, %s321
      %p325 = scmp.eq.s32.totalorder %s28, 0
      %p326 = por %p324, %p325
      %p327 = scmp.ne.s32.totalorder %s319, %s321
      %p328 = scmp.eq.s32.totalorder %s33, 1
      %p329 = por %p327, %p328
      %p330 = scmp.ne.s32.totalorder %s321, %s322
      %p331 = scmp.eq.s32.totalorder %s33, 0
      %p332 = por %p330, %p331
      %p333 = scmp.ne.s32.totalorder %s321, %s322
      %p334 = scmp.eq.s32.totalorder %s34, 1
      %p335 = por %p333, %p334
      %p337 = scmp.ne.s32.totalorder %s322, %s336
      %p338 = scmp.eq.s32.totalorder %s34, 0
      %p339 = por %p337, %p338
      %s340 = ssub.s32 %s35, %s47
      %p341 = scmp.eq.s32.totalorder %s340, 0
      %s343 = sadd.s32 %s342, 1
      %s344 = scalar_select %p341, %s342, %s343
      %p347 = pneg %p341
      %p348 = scmp.eq.s32.totalorder %s28, 1
      %p349 = por %p347, %p348
      %p350 = scmp.ne.s32.totalorder %s342, %s345
      %p351 = scmp.eq.s32.totalorder %s28, 0
      %p352 = por %p350, %p351
      %p353 = scmp.ne.s32.totalorder %s342, %s345
      %p354 = scmp.eq.s32.totalorder %s33, 1
      %p355 = por %p353, %p354
      %p356 = scmp.ne.s32.totalorder %s345, %s346
      %p357 = scmp.eq.s32.totalorder %s33, 0
      %p358 = por %p356, %p357
      %p359 = scmp.ne.s32.totalorder %s345, %s346
      %p360 = scmp.eq.s32.totalorder %s34, 1
      %p361 = por %p359, %p360
      %p363 = scmp.ne.s32.totalorder %s346, %s362
      %p364 = scmp.eq.s32.totalorder %s34, 0
      %p365 = por %p363, %p364
      %p366 = scmp.le.s32.totalorder 1, %s28
      %p367 = scmp.lt.s32.totalorder %s28, 3
      %p368 = pnand %p366, %p367
      %p369 = pneg %p368
      // Predicated region
      $region9: #{tpu_custom_call.1} parent=5 // pred_check
        _
      $region10: #{tpu_custom_call.1} parent=5 // pred_check_branch
        %371 = sbr.rel (%p368) target = $region12
      $region11: #{tpu_custom_call.1} parent=5 // pred_region
        %s372 = ssub.s32 %s28, 1
        // Predicated region
        $region13: #{tpu_custom_call.1} parent=11 // pred_check
          %p373 = pneg %p66
        $region14: #{tpu_custom_call.1} parent=11 // pred_check_branch
          %375 = sbr.rel (%p373) target = $region16
        $region15: #{tpu_custom_call.1} parent=11 // pred_region
          %s376 = smul.u32 2, %s37
          %p377 = scmp.lt.s32.totalorder %s376, 1
          %s378 = scalar_select %p377, %s376, 1
          %s379 = smul.addr %s378, 8
          %s380 = scalar_lea.vmem %s1, %s379
          %s381 = smul.u32 2, %s37
        $region16: #{tpu_custom_call.1} parent=11 // pred_fallthru
          _
        // Predicated region
        $region17: #{tpu_custom_call.1} parent=11 // pred_check
          %p382 = pneg %p87
        $region18: #{tpu_custom_call.1} parent=11 // pred_check_branch
          %384 = sbr.rel (%p382) target = $region20
        $region19: #{tpu_custom_call.1} parent=11 // pred_region
          _
        $region20: #{tpu_custom_call.1} parent=11 // pred_fallthru
          _
        // Predicated region
        $region21: #{tpu_custom_call.1} parent=11 // pred_check
          %p385 = pneg %p108
        $region22: #{tpu_custom_call.1} parent=11 // pred_check_branch
          %387 = sbr.rel (%p385) target = $region24
        $region23: #{tpu_custom_call.1} parent=11 // pred_region
          _
        $region24: #{tpu_custom_call.1} parent=11 // pred_fallthru
          _
        // Predicated region
        $region25: #{tpu_custom_call.1} parent=11 // pred_check
          %p388 = pneg %p311
        $region26: #{tpu_custom_call.1} parent=11 // pred_check_branch
          %390 = sbr.rel (%p388) target = $region28
        $region27: #{tpu_custom_call.1} parent=11 // pred_region
          _
        $region28: #{tpu_custom_call.1} parent=11 // pred_fallthru
          _
        // Predicated region
        $region29: #{tpu_custom_call.1} parent=11 // pred_check
          %p391 = pneg %p332
        $region30: #{tpu_custom_call.1} parent=11 // pred_check_branch
          %393 = sbr.rel (%p391) target = $region32
        $region31: #{tpu_custom_call.1} parent=11 // pred_region
          _
        $region32: #{tpu_custom_call.1} parent=11 // pred_fallthru
          _
      $region12: #{tpu_custom_call.1} parent=5 // pred_fallthru
        _
      %p394 = scmp.lt.s32.totalorder %s28, 2
      // Predicated region
      $region33: #{tpu_custom_call.1} parent=5 // pred_check
        %p395 = pneg %p394
      $region34: #{tpu_custom_call.1} parent=5 // pred_check_branch
        %397 = sbr.rel (%p395) target = $region36
      $region35: #{tpu_custom_call.1} parent=5 // pred_region
        // Predicated region
        $region37: #{tpu_custom_call.1} parent=35 // pred_check
          %p398 = pneg %p128
        $region38: #{tpu_custom_call.1} parent=35 // pred_check_branch
          %400 = sbr.rel (%p398) target = $region40
        $region39: #{tpu_custom_call.1} parent=35 // pred_region
          %p401 = scmp.lt.s32.totalorder %s36, 1
          %s402 = scalar_select %p401, %s36, 1
          %s403 = smul.addr %s402, 4
          %s404 = smul.addr %s403, 4
          %s405 = scalar_lea.vmem %s4, %s404
        $region40: #{tpu_custom_call.1} parent=35 // pred_fallthru
          _
        // Predicated region
        $region41: #{tpu_custom_call.1} parent=35 // pred_check
          %p406 = pneg %p154
        $region42: #{tpu_custom_call.1} parent=35 // pred_check_branch
          %408 = sbr.rel (%p406) target = $region44
        $region43: #{tpu_custom_call.1} parent=35 // pred_region
          %p409 = scmp.lt.s32.totalorder %s36, 1
          %s410 = scalar_select %p409, %s36, 1
          %s411 = scalar_lea.vmem %s5, %s410
        $region44: #{tpu_custom_call.1} parent=35 // pred_fallthru
          _
        // Predicated region
        $region45: #{tpu_custom_call.1} parent=35 // pred_check
          %p412 = pneg %p180
        $region46: #{tpu_custom_call.1} parent=35 // pred_check_branch
          %414 = sbr.rel (%p412) target = $region48
        $region47: #{tpu_custom_call.1} parent=35 // pred_region
          %p415 = scmp.lt.s32.totalorder %s36, 1
          %s416 = scalar_select %p415, %s36, 1
          %s417 = smul.addr %s416, 4
          %s418 = smul.addr %s417, 4
          %s419 = scalar_lea.vmem %s6, %s418
        $region48: #{tpu_custom_call.1} parent=35 // pred_fallthru
          _
        // Predicated region
        $region49: #{tpu_custom_call.1} parent=35 // pred_check
          %p420 = pneg %p206
        $region50: #{tpu_custom_call.1} parent=35 // pred_check_branch
          %422 = sbr.rel (%p420) target = $region52
        $region51: #{tpu_custom_call.1} parent=35 // pred_region
          %p423 = scmp.lt.s32.totalorder %s36, 1
          %s424 = scalar_select %p423, %s36, 1
          %s425 = smul.addr %s424, 8
          %s426 = scalar_lea.vmem %s7, %s425
        $region52: #{tpu_custom_call.1} parent=35 // pred_fallthru
          _
        // Predicated region
        $region53: #{tpu_custom_call.1} parent=35 // pred_check
          %p427 = pneg %p232
        $region54: #{tpu_custom_call.1} parent=35 // pred_check_branch
          %429 = sbr.rel (%p427) target = $region56
        $region55: #{tpu_custom_call.1} parent=35 // pred_region
          %p430 = scmp.lt.s32.totalorder %s36, 1
          %s431 = scalar_select %p430, %s36, 1
          %s432 = smul.addr %s431, 4
          %s433 = smul.addr %s432, 4
          %s434 = scalar_lea.vmem %s8, %s433
        $region56: #{tpu_custom_call.1} parent=35 // pred_fallthru
          _
        // Predicated region
        $region57: #{tpu_custom_call.1} parent=35 // pred_check
          %p435 = pneg %p258
        $region58: #{tpu_custom_call.1} parent=35 // pred_check_branch
          %437 = sbr.rel (%p435) target = $region60
        $region59: #{tpu_custom_call.1} parent=35 // pred_region
          %p438 = scmp.lt.s32.totalorder %s36, 1
          %s439 = scalar_select %p438, %s36, 1
          %s440 = scalar_lea.vmem %s9, %s439
        $region60: #{tpu_custom_call.1} parent=35 // pred_fallthru
          _
        // Predicated region
        $region61: #{tpu_custom_call.1} parent=35 // pred_check
          %p441 = pneg %p284
        $region62: #{tpu_custom_call.1} parent=35 // pred_check_branch
          %443 = sbr.rel (%p441) target = $region64
        $region63: #{tpu_custom_call.1} parent=35 // pred_region
          %p444 = scmp.lt.s32.totalorder %s36, 1
          %s445 = scalar_select %p444, %s36, 1
          %s446 = smul.addr %s445, 16
          %s447 = smul.addr %s446, 4
          %s448 = scalar_lea.vmem %s10, %s447
        $region64: #{tpu_custom_call.1} parent=35 // pred_fallthru
          _
      $region36: #{tpu_custom_call.1} parent=5 // pred_fallthru
        _
      %p449 = scmp.le.s32.totalorder 1, %s28
      %p450 = scmp.lt.s32.totalorder %s28, 3
      %p451 = pnand %p449, %p450
      %p452 = pneg %p451
      // Predicated region
      $region65: #{tpu_custom_call.1} parent=5 // pred_check
        _
      $region66: #{tpu_custom_call.1} parent=5 // pred_check_branch
        %454 = sbr.rel (%p451) target = $region68
      $region67: #{tpu_custom_call.1} parent=5 // pred_region
        %s455 = ssub.s32 %s28, 1
        %s456 = smul.u32 2, %s37
        %p457 = scmp.lt.s32.totalorder %s456, 1
        %s458 = scalar_select %p457, %s456, 1
        %s459 = smul.addr %s458, 8
        %s460 = scalar_lea.vmem %s1, %s459
        %p461 = pneg %p66
        %p462 = pneg %p63
        %p463 = pneg %p87
        %p464 = pneg %p84
        %p465 = pneg %p108
        %p466 = pneg %p105
        %p467 = scmp.lt.s32.totalorder %s38, 1
        %s468 = scalar_select %p467, %s38, 1
        %s469 = smul.addr %s468, 4
        %s470 = smul.addr %s469, 4
        %s471 = scalar_lea.vmem %s4, %s470
        %p472 = pneg %p134
        %p473 = pneg %p131
        %p474 = scmp.lt.s32.totalorder %s38, 1
        %s475 = scalar_select %p474, %s38, 1
        %s476 = scalar_lea.vmem %s5, %s475
        %p477 = pneg %p160
        %p478 = pneg %p157
        %p479 = scmp.lt.s32.totalorder %s38, 1
        %s480 = scalar_select %p479, %s38, 1
        %s481 = smul.addr %s480, 4
        %s482 = smul.addr %s481, 4
        %s483 = scalar_lea.vmem %s6, %s482
        %p484 = pneg %p186
        %p485 = pneg %p183
        %p486 = scmp.lt.s32.totalorder %s38, 1
        %s487 = scalar_select %p486, %s38, 1
        %s488 = smul.addr %s487, 8
        %s489 = scalar_lea.vmem %s7, %s488
        %p490 = pneg %p212
        %p491 = pneg %p209
        %p492 = scmp.lt.s32.totalorder %s38, 1
        %s493 = scalar_select %p492, %s38, 1
        %s494 = smul.addr %s493, 4
        %s495 = smul.addr %s494, 4
        %s496 = scalar_lea.vmem %s8, %s495
        %p497 = pneg %p238
        %p498 = pneg %p235
        %p499 = scmp.lt.s32.totalorder %s38, 1
        %s500 = scalar_select %p499, %s38, 1
        %s501 = scalar_lea.vmem %s9, %s500
        %p502 = pneg %p264
        %p503 = pneg %p261
        %p504 = scmp.lt.s32.totalorder %s38, 1
        %s505 = scalar_select %p504, %s38, 1
        %s506 = smul.addr %s505, 16
        %s507 = smul.addr %s506, 4
        %s508 = scalar_lea.vmem %s10, %s507
        %p509 = pneg %p290
        %p510 = pneg %p287
        %p511 = pneg %p311
        %p512 = pneg %p308
        %p513 = pneg %p332
        %p514 = pneg %p329
        %p515 = pneg %p358
        %p516 = pneg %p355
        %s517 = smul.u32 2, %s37
        %p518 = scmp.lt.s32.totalorder %s517, 1
        %s519 = scalar_select %p518, %s517, 1
        %s520 = smul.addr %s519, 8
        %s521 = scalar_lea.vmem %s1, %s520
        %s522 = smul.u32 2, %s37
        %p523 = scmp.lt.s32.totalorder %s38, 1
        %s524 = scalar_select %p523, %s38, 1
        %s525 = smul.addr %s524, 4
        %s526 = smul.addr %s525, 4
        %s527 = scalar_lea.vmem %s4, %s526
        %p528 = scmp.lt.s32.totalorder %s38, 1
        %s529 = scalar_select %p528, %s38, 1
        %s530 = scalar_lea.vmem %s5, %s529
        %p531 = scmp.lt.s32.totalorder %s38, 1
        %s532 = scalar_select %p531, %s38, 1
        %s533 = smul.addr %s532, 4
        %s534 = smul.addr %s533, 4
        %s535 = scalar_lea.vmem %s6, %s534
        %p536 = scmp.lt.s32.totalorder %s38, 1
        %s537 = scalar_select %p536, %s38, 1
        %s538 = smul.addr %s537, 8
        %s539 = scalar_lea.vmem %s7, %s538
        %p540 = scmp.lt.s32.totalorder %s38, 1
        %s541 = scalar_select %p540, %s38, 1
        %s542 = smul.addr %s541, 4
        %s543 = smul.addr %s542, 4
        %s544 = scalar_lea.vmem %s8, %s543
        %p545 = scmp.lt.s32.totalorder %s38, 1
        %s546 = scalar_select %p545, %s38, 1
        %s547 = scalar_lea.vmem %s9, %s546
        %p548 = scmp.lt.s32.totalorder %s38, 1
        %s549 = scalar_select %p548, %s38, 1
        %s550 = smul.addr %s549, 16
        %s551 = smul.addr %s550, 4
        %s552 = scalar_lea.vmem %s10, %s551
        %p554 = scmp.eq.s32.totalorder %s38, 0
        // Predicated region
        $region69: #{tpu_custom_call.1} parent=67 // pred_check
          %p555 = pneg %p554
        $region70: #{tpu_custom_call.1} parent=67 // pred_check_branch
          %557 = sbr.rel (%p555) target = $region72
        $region71: #{tpu_custom_call.1} parent=67 // pred_region
          %v558 = vld [vmem:[%s521] sm:$0xff]
          %v559 = vld [vmem:[%s521 + $0x8] sm:$0xff]
          %v560 = vld [vmem:[%s2] sm:$0xff]
          %v561 = vadd.f32 %v558, %v560
          %v562 = vadd.f32 %v559, %v560
          %vm563 = vcmask 261120
          %564 = vst.msk [vmem:[#allocation2] sm:$0xff] %vm563, %v561
          %565 = vst.msk [vmem:[#allocation2 + $0x8] sm:$0xff] %vm563, %v562
        $region72: #{tpu_custom_call.1} parent=67 // pred_fallthru
          _
        %v566 = vld [vmem:[#allocation2] sm:$0xff]
        %v567 = vld [vmem:[#allocation2 + $0x8] sm:$0xff]
        %v568 = vld [vmem:[%s539] sm:$0x3f]
        %vm569 = vcmask 261120
        %v570 = vsel %vm569, %v566, 0.0
        %571 = vadd.xlane.f32.xlu0 %v570
        %v572 = vpop.xlane.xlu0 %571
        %v573 = vsel %vm569, %v567, 0.0
        %574 = vadd.xlane.f32.xlu0 %v573
        %v575 = vpop.xlane.xlu0 %574
        %v576 = vrcp.pop 32.0
        %v577 = vmul.f32 32.0, %v576
        %v578 = vsub.f32 1.0, %v577
        %v579 = vmul.f32 %v576, %v578
        %v580 = vadd.f32 %v576, %v579
        %vm581 = vweird.f32 %v576
        %v582 = vsel %vm581, %v576, %v580
        %v583 = vmul.f32 %v572, %v582
        %v584 = vmul.f32 %v575, %v582
        %v585 = vsub.f32 %v566, %v583
        %v586 = vsub.f32 %v567, %v584
        %v587 = vmul.f32 %v585, %v585
        %v588 = vmul.f32 %v586, %v586
        %v589 = vsel %vm569, %v587, 0.0
        %590 = vadd.xlane.f32.xlu0 %v589
        %v591 = vpop.xlane.xlu0 %590
        %v592 = vsel %vm569, %v588, 0.0
        %593 = vadd.xlane.f32.xlu0 %v592
        %v594 = vpop.xlane.xlu0 %593
        %v595 = vmul.f32 %v591, %v582
        %v596 = vmul.f32 %v594, %v582
        %v597 = vadd.f32 %v595, 1e-05
        %v598 = vadd.f32 %v596, 1e-05
        %v599 = vrsqrt.pop %v597
        %v600 = vmul.f32 %v599, %v597
        %v601 = vmul.f32 %v600, %v599
        %v602 = vmul.f32 0.5, %v601
        %v603 = vsub.f32 1.5, %v602
        %v604 = vmul.f32 %v599, %v603
        %vm605 = vweird.f32 %v597
        %vm606 = vweird.f32 %v599
        %vm607 = vmor %vm605, %vm606
        %v608 = vsel %vm607, %v599, %v604
        %v609 = vrsqrt.pop %v598
        %v610 = vmul.f32 %v609, %v598
        %v611 = vmul.f32 %v610, %v609
        %v612 = vmul.f32 0.5, %v611
        %v613 = vsub.f32 1.5, %v612
        %v614 = vmul.f32 %v609, %v613
        %vm615 = vweird.f32 %v598
        %vm616 = vweird.f32 %v609
        %vm617 = vmor %vm615, %vm616
        %v618 = vsel %vm617, %v609, %v614
        %v619 = vmul.f32 %v585, %v608
        %v620 = vmul.f32 %v586, %v618
        %v621 = vperm.slane %v568, 0
        %v622 = vmul.f32 %v619, %v621
        %v623 = vmul.f32 %v620, %v621
        %v624 = vperm.slane %v568, 1
        %v625 = vadd.f32 %v622, %v624
        %v626 = vadd.f32 %v623, %v624
        %v627 = vpack.c.bf16 %v626, %v625
        %v628 = vld [vmem:[%s527] sm:$0xf]
        %v629 = vld [vmem:[%s527 + $0x4] sm:$0xf]
        %v630 = vld [vmem:[%s527 + $0x8] sm:$0xf]
        %v631 = vld [vmem:[%s527 + $0xc] sm:$0xf]
        %v632 = vld [vmem:[%s530] sm:$0x1]
        %v634 = vperm.slane %v632, 0
        %v640 = vunpack.c.l.b16 %v628
        %v641 = vunpack.c.l.b16 %v629
        %v642 = vunpack.c.l.b16 %v630
        %v643 = vunpack.c.l.b16 %v631
        %v644 = vpack.c.b16 %v641, %v640
        %v645 = vpack.c.b16 %v643, %v642
        %v649 = vsel %vm569, %v627, 0
        %651 = vmatpush.bf16.msra.mxu0 0
        %652 = vmatpush.bf16.msra.mxu0 0
        %653 = vmatpush.bf16.msra.mxu0 0
        %654 = vmatpush.bf16.msra.mxu0 0
        %655 = vmatpush.bf16.msra.mxu0 0
        %656 = vmatpush.bf16.msra.mxu0 0
        %657 = vmatpush.bf16.msra.mxu0 %v645
        %658 = vmatpush.bf16.msra.mxu0 %v644
        %659 = vmatmul.bf16.gmra.mxu0 %v649
        %v660 = vpop.f32.mrf.mxu0
        %v661 = vadd.f32 %v634, %v660
        %v662 = vpop.f32.mrf.mxu0
        %v663 = vadd.f32 %v634, %v662
        %664 = vdwg.mxu0
        %v665 = vmul.f32 %v661, 0.35355338
        %v666 = vmul.f32 %v663, 0.35355338
        %v667 = vpack.c.bf16 %v665, %v665
        %v668 = vpack.c.bf16 %v666, %v666
        %v669 = vpack.c.bf16 %v661, %v661
        %v670 = vpack.c.bf16 %v663, %v663
        %v671 = vld [vmem:[%s535] sm:$0xf]
        %v672 = vld [vmem:[%s535 + $0x4] sm:$0xf]
        %v673 = vld [vmem:[%s535 + $0x8] sm:$0xf]
        %v674 = vld [vmem:[%s535 + $0xc] sm:$0xf]
        %v675 = vld [vmem:[%s3] sm:$0xff]
        %v677 = vunpack.c.l.b16 %v669
        %v678 = vpack.c.b16 %v677, %v677
        %679 = vrot.lane.b32.xlu0 %v678, 96
        %v680 = vpop.permute.xlu0 %679
        %vm681 = vcmask 64512
        %v683 = vsel %vm681, %v667, 0
        %v686 = vsel %vm681, %v680, 0
        %688 = vmatpush.bf16.xpose.msra.mxu0 0
        %689 = vmatpush.bf16.xpose.msra.mxu0 0
        %690 = vmatpush.bf16.xpose.msra.mxu0 0
        %691 = vmatpush.bf16.xpose.msra.mxu0 0
        %692 = vmatpush.bf16.xpose.msra.mxu0 0
        %693 = vmatpush.bf16.xpose.msra.mxu0 0
        %694 = vmatpush.bf16.xpose.msra.mxu0 0
        %695 = vmatpush.bf16.xpose.msra.mxu0 %v686
        %696 = vmatmul.bf16.gmra.mxu0 %v683
        %v697 = vpop.f32.mrf.mxu0
        %v698 = vadd.f32 %v675, %v697
        %v699 = vpop.f32.mrf.mxu0
        %700 = vdwg.mxu0
        %v702 = vunpack.c.l.b16 %v670
        %v703 = vpack.c.b16 %v702, %v702
        %704 = vrot.lane.b32.xlu0 %v703, 96
        %v705 = vpop.permute.xlu0 %704
        %v707 = vsel %vm681, %v668, 0
        %v710 = vsel %vm681, %v705, 0
        %712 = vmatpush.bf16.xpose.msra.mxu0 0
        %713 = vmatpush.bf16.xpose.msra.mxu0 0
        %714 = vmatpush.bf16.xpose.msra.mxu0 0
        %715 = vmatpush.bf16.xpose.msra.mxu0 0
        %716 = vmatpush.bf16.xpose.msra.mxu0 0
        %717 = vmatpush.bf16.xpose.msra.mxu0 0
        %718 = vmatpush.bf16.xpose.msra.mxu0 0
        %719 = vmatpush.bf16.xpose.msra.mxu0 %v710
        %720 = vmatmul.bf16.gmra.mxu0 %v707
        %v721 = vpop.f32.mrf.mxu0
        %v722 = vadd.f32 %v675, %v721
        %v723 = vpop.f32.mrf.mxu0
        %724 = vdwg.mxu0
        %v725 = vsel %vm681, %v698, -inf
        %726 = vmax.xlane.f32.xlu0 %v725
        %v727 = vpop.xlane.xlu0 %726
        %v728 = vsel %vm681, %v722, -inf
        %729 = vmax.xlane.f32.xlu0 %v728
        %v730 = vpop.xlane.xlu0 %729
        %v731 = vsub.f32 %v698, %v727
        %v732 = vsub.f32 %v722, %v730
        %v733 = vmul.f32 %v731, 1.442695
        %v734 = vpow.pop %v733
        %v735 = vmul.f32 %v732, 1.442695
        %v736 = vpow.pop %v735
        %v737 = vsel %vm681, %v734, 0.0
        %738 = vadd.xlane.f32.xlu0 %v737
        %v739 = vpop.xlane.xlu0 %738
        %v740 = vsel %vm681, %v736, 0.0
        %741 = vadd.xlane.f32.xlu0 %v740
        %v742 = vpop.xlane.xlu0 %741
        %v743 = vrcp.pop %v739
        %v744 = vmul.f32 %v739, %v743
        %v745 = vsub.f32 1.0, %v744
        %v746 = vmul.f32 %v743, %v745
        %v747 = vadd.f32 %v743, %v746
        %vm748 = vweird.f32 %v739
        %vm749 = vweird.f32 %v743
        %vm750 = vmor %vm748, %vm749
        %v751 = vsel %vm750, %v743, %v747
        %v752 = vand.u32 2147483647, %v739
        %vm753 = vcmp.eq.f32.partialorder %v752, 8.507059e+37
        %v754 = vand.u32 %v739, 2147483648
        %v755 = vor.u32 1.1754944e-38, %v754
        %v756 = vsel %vm753, %v755, %v751
        %v757 = vmul.f32 %v734, %v756
        %v758 = vrcp.pop %v742
        %v759 = vmul.f32 %v742, %v758
        %v760 = vsub.f32 1.0, %v759
        %v761 = vmul.f32 %v758, %v760
        %v762 = vadd.f32 %v758, %v761
        %vm763 = vweird.f32 %v742
        %vm764 = vweird.f32 %v758
        %vm765 = vmor %vm763, %vm764
        %v766 = vsel %vm765, %v758, %v762
        %v767 = vand.u32 2147483647, %v742
        %vm768 = vcmp.eq.f32.partialorder %v767, 8.507059e+37
        %v769 = vand.u32 %v742, 2147483648
        %v770 = vor.u32 1.1754944e-38, %v769
        %v771 = vsel %vm768, %v770, %v766
        %v772 = vmul.f32 %v736, %v771
        %v773 = vpack.c.bf16 %v757, %v757
        %v774 = vpack.c.bf16 %v772, %v772
        %775 = vrot.lane.b32.xlu0 %v678, 64
        %v776 = vpop.permute.xlu0 %775
        %v778 = vsel %vm681, %v773, 0
        %vm780 = vcmask 1043456
        %v782 = vsel %vm780, %v776, 0
        %784 = vmatpush.bf16.msra.mxu0 0
        %785 = vmatpush.bf16.msra.mxu0 0
        %786 = vmatpush.bf16.msra.mxu0 0
        %787 = vmatpush.bf16.msra.mxu0 0
        %788 = vmatpush.bf16.msra.mxu0 0
        %789 = vmatpush.bf16.msra.mxu0 0
        %790 = vmatpush.bf16.msra.mxu0 0
        %791 = vmatpush.bf16.msra.mxu0 %v782
        %792 = vmatmul.bf16.gmra.mxu0 %v778
        %v793 = vpop.f32.mrf.mxu0
        %v794 = vadd.f32 0.0, %v793
        %v795 = vpop.f32.mrf.mxu0
        %796 = vdwg.mxu0
        %797 = vrot.lane.b32.xlu0 %v703, 64
        %v798 = vpop.permute.xlu0 %797
        %v800 = vsel %vm681, %v774, 0
        %v803 = vsel %vm780, %v798, 0
        %805 = vmatpush.bf16.msra.mxu0 0
        %806 = vmatpush.bf16.msra.mxu0 0
        %807 = vmatpush.bf16.msra.mxu0 0
        %808 = vmatpush.bf16.msra.mxu0 0
        %809 = vmatpush.bf16.msra.mxu0 0
        %810 = vmatpush.bf16.msra.mxu0 0
        %811 = vmatpush.bf16.msra.mxu0 0
        %812 = vmatpush.bf16.msra.mxu0 %v803
        %813 = vmatmul.bf16.gmra.mxu0 %v800
        %v814 = vpop.f32.mrf.mxu0
        %v815 = vadd.f32 0.0, %v814
        %v816 = vpop.f32.mrf.mxu0
        %817 = vdwg.mxu0
        %v818 = vpack.c.bf16 %v794, %v794
        %v819 = vpack.c.bf16 %v815, %v815
        %v821 = vunpack.c.l.b16 %v667
        %v822 = vpack.c.b16 %v821, %v821
        %823 = vrot.lane.b32.xlu0 %v822, 120
        %v824 = vpop.permute.xlu0 %823
        %825 = vrot.lane.b32.xlu0 %v678, 88
        %v826 = vpop.permute.xlu0 %825
        %v828 = vsel %vm681, %v824, 0
        %v831 = vsel %vm681, %v826, 0
        %833 = vmatpush.bf16.xpose.msra.mxu0 0
        %834 = vmatpush.bf16.xpose.msra.mxu0 0
        %835 = vmatpush.bf16.xpose.msra.mxu0 0
        %836 = vmatpush.bf16.xpose.msra.mxu0 0
        %837 = vmatpush.bf16.xpose.msra.mxu0 0
        %838 = vmatpush.bf16.xpose.msra.mxu0 0
        %839 = vmatpush.bf16.xpose.msra.mxu0 0
        %840 = vmatpush.bf16.xpose.msra.mxu0 %v831
        %841 = vmatmul.bf16.gmra.mxu0 %v828
        %v842 = vpop.f32.mrf.mxu0
        %v843 = vadd.f32 %v675, %v842
        %v844 = vpop.f32.mrf.mxu0
        %845 = vdwg.mxu0
        %v847 = vunpack.c.l.b16 %v668
        %v848 = vpack.c.b16 %v847, %v847
        %849 = vrot.lane.b32.xlu0 %v848, 120
        %v850 = vpop.permute.xlu0 %849
        %851 = vrot.lane.b32.xlu0 %v703, 88
        %v852 = vpop.permute.xlu0 %851
        %v854 = vsel %vm681, %v850, 0
        %v857 = vsel %vm681, %v852, 0
        %859 = vmatpush.bf16.xpose.msra.mxu0 0
        %860 = vmatpush.bf16.xpose.msra.mxu0 0
        %861 = vmatpush.bf16.xpose.msra.mxu0 0
        %862 = vmatpush.bf16.xpose.msra.mxu0 0
        %863 = vmatpush.bf16.xpose.msra.mxu0 0
        %864 = vmatpush.bf16.xpose.msra.mxu0 0
        %865 = vmatpush.bf16.xpose.msra.mxu0 0
        %866 = vmatpush.bf16.xpose.msra.mxu0 %v857
        %867 = vmatmul.bf16.gmra.mxu0 %v854
        %v868 = vpop.f32.mrf.mxu0
        %v869 = vadd.f32 %v675, %v868
        %v870 = vpop.f32.mrf.mxu0
        %871 = vdwg.mxu0
        %v872 = vsel %vm681, %v843, -inf
        %873 = vmax.xlane.f32.xlu0 %v872
        %v874 = vpop.xlane.xlu0 %873
        %v875 = vsel %vm681, %v869, -inf
        %876 = vmax.xlane.f32.xlu0 %v875
        %v877 = vpop.xlane.xlu0 %876
        %v878 = vsub.f32 %v843, %v874
        %v879 = vsub.f32 %v869, %v877
        %v880 = vmul.f32 %v878, 1.442695
        %v881 = vpow.pop %v880
        %v882 = vmul.f32 %v879, 1.442695
        %v883 = vpow.pop %v882
        %v884 = vsel %vm681, %v881, 0.0
        %885 = vadd.xlane.f32.xlu0 %v884
        %v886 = vpop.xlane.xlu0 %885
        %v887 = vsel %vm681, %v883, 0.0
        %888 = vadd.xlane.f32.xlu0 %v887
        %v889 = vpop.xlane.xlu0 %888
        %v890 = vrcp.pop %v886
        %v891 = vmul.f32 %v886, %v890
        %v892 = vsub.f32 1.0, %v891
        %v893 = vmul.f32 %v890, %v892
        %v894 = vadd.f32 %v890, %v893
        %vm895 = vweird.f32 %v886
        %vm896 = vweird.f32 %v890
        %vm897 = vmor %vm895, %vm896
        %v898 = vsel %vm897, %v890, %v894
        %v899 = vand.u32 2147483647, %v886
        %vm900 = vcmp.eq.f32.partialorder %v899, 8.507059e+37
        %v901 = vand.u32 %v886, 2147483648
        %v902 = vor.u32 1.1754944e-38, %v901
        %v903 = vsel %vm900, %v902, %v898
        %v904 = vmul.f32 %v881, %v903
        %v905 = vrcp.pop %v889
        %v906 = vmul.f32 %v889, %v905
        %v907 = vsub.f32 1.0, %v906
        %v908 = vmul.f32 %v905, %v907
        %v909 = vadd.f32 %v905, %v908
        %vm910 = vweird.f32 %v889
        %vm911 = vweird.f32 %v905
        %vm912 = vmor %vm910, %vm911
        %v913 = vsel %vm912, %v905, %v909
        %v914 = vand.u32 2147483647, %v889
        %vm915 = vcmp.eq.f32.partialorder %v914, 8.507059e+37
        %v916 = vand.u32 %v889, 2147483648
        %v917 = vor.u32 1.1754944e-38, %v916
        %v918 = vsel %vm915, %v917, %v913
        %v919 = vmul.f32 %v883, %v918
        %v920 = vpack.c.bf16 %v904, %v904
        %v921 = vpack.c.bf16 %v919, %v919
        %922 = vrot.lane.b32.xlu0 %v678, 56
        %v923 = vpop.permute.xlu0 %922
        %v925 = vsel %vm681, %v920, 0
        %v928 = vsel %vm780, %v923, 0
        %930 = vmatpush.bf16.msra.mxu0 0
        %931 = vmatpush.bf16.msra.mxu0 0
        %932 = vmatpush.bf16.msra.mxu0 0
        %933 = vmatpush.bf16.msra.mxu0 0
        %934 = vmatpush.bf16.msra.mxu0 0
        %935 = vmatpush.bf16.msra.mxu0 0
        %936 = vmatpush.bf16.msra.mxu0 0
        %937 = vmatpush.bf16.msra.mxu0 %v928
        %938 = vmatmul.bf16.gmra.mxu0 %v925
        %v939 = vpop.f32.mrf.mxu0
        %v940 = vadd.f32 0.0, %v939
        %v941 = vpop.f32.mrf.mxu0
        %942 = vdwg.mxu0
        %943 = vrot.lane.b32.xlu0 %v703, 56
        %v944 = vpop.permute.xlu0 %943
        %v946 = vsel %vm681, %v921, 0
        %v949 = vsel %vm780, %v944, 0
        %951 = vmatpush.bf16.msra.mxu0 0
        %952 = vmatpush.bf16.msra.mxu0 0
        %953 = vmatpush.bf16.msra.mxu0 0
        %954 = vmatpush.bf16.msra.mxu0 0
        %955 = vmatpush.bf16.msra.mxu0 0
        %956 = vmatpush.bf16.msra.mxu0 0
        %957 = vmatpush.bf16.msra.mxu0 0
        %958 = vmatpush.bf16.msra.mxu0 %v949
        %959 = vmatmul.bf16.gmra.mxu0 %v946
        %v960 = vpop.f32.mrf.mxu0
        %v961 = vadd.f32 0.0, %v960
        %v962 = vpop.f32.mrf.mxu0
        %963 = vdwg.mxu0
        %v964 = vpack.c.bf16 %v940, %v940
        %v965 = vpack.c.bf16 %v961, %v961
        %v968 = vunpack.c.l.b16 %v964
        %v969 = vunpack.c.l.b16 %v965
        %v970 = vpack.c.b16 %v969, %v968
        %v972 = vsel %vm681, %v970, 0
        %v975 = vsel %vm780, %v672, 0
        %977 = vmatpush.bf16.msra.mxu0 0
        %978 = vmatpush.bf16.msra.mxu0 0
        %979 = vmatpush.bf16.msra.mxu0 0
        %980 = vmatpush.bf16.msra.mxu0 0
        %981 = vmatpush.bf16.msra.mxu0 0
        %982 = vmatpush.bf16.msra.mxu0 0
        %983 = vmatpush.bf16.msra.mxu0 0
        %984 = vmatpush.bf16.msra.mxu0 %v975
        %985 = vmatmul.bf16.gmra.mxu0 %v972
        %v986 = vpop.f32.mrf.mxu0
        %v987 = vadd.f32 0.0, %v986
        %v988 = vpop.f32.mrf.mxu0
        %v989 = vadd.f32 0.0, %v988
        %990 = vdwg.mxu0
        %v993 = vunpack.c.l.b16 %v818
        %v994 = vunpack.c.l.b16 %v819
        %v995 = vpack.c.b16 %v994, %v993
        %v997 = vsel %vm681, %v995, 0
        %v1000 = vsel %vm780, %v671, 0
        %1002 = vmatpush.bf16.msra.mxu0 0
        %1003 = vmatpush.bf16.msra.mxu0 0
        %1004 = vmatpush.bf16.msra.mxu0 0
        %1005 = vmatpush.bf16.msra.mxu0 0
        %1006 = vmatpush.bf16.msra.mxu0 0
        %1007 = vmatpush.bf16.msra.mxu0 0
        %1008 = vmatpush.bf16.msra.mxu0 0
        %1009 = vmatpush.bf16.msra.mxu0 %v1000
        %1010 = vmatmul.bf16.gmra.mxu0 %v997
        %v1011 = vpop.f32.mrf.mxu0
        %v1012 = vadd.f32 %v987, %v1011
        %v1013 = vpop.f32.mrf.mxu0
        %v1014 = vadd.f32 %v989, %v1013
        %1015 = vdwg.mxu0
        %1016 = vrot.lane.b32.xlu0 %v822, 112
        %v1017 = vpop.permute.xlu0 %1016
        %1018 = vrot.lane.b32.xlu0 %v678, 80
        %v1019 = vpop.permute.xlu0 %1018
        %v1021 = vsel %vm681, %v1017, 0
        %v1024 = vsel %vm681, %v1019, 0
        %1026 = vmatpush.bf16.xpose.msra.mxu0 0
        %1027 = vmatpush.bf16.xpose.msra.mxu0 0
        %1028 = vmatpush.bf16.xpose.msra.mxu0 0
        %1029 = vmatpush.bf16.xpose.msra.mxu0 0
        %1030 = vmatpush.bf16.xpose.msra.mxu0 0
        %1031 = vmatpush.bf16.xpose.msra.mxu0 0
        %1032 = vmatpush.bf16.xpose.msra.mxu0 0
        %1033 = vmatpush.bf16.xpose.msra.mxu0 %v1024
        %1034 = vmatmul.bf16.gmra.mxu0 %v1021
        %v1035 = vpop.f32.mrf.mxu0
        %v1036 = vadd.f32 %v675, %v1035
        %v1037 = vpop.f32.mrf.mxu0
        %1038 = vdwg.mxu0
        %1039 = vrot.lane.b32.xlu0 %v848, 112
        %v1040 = vpop.permute.xlu0 %1039
        %1041 = vrot.lane.b32.xlu0 %v703, 80
        %v1042 = vpop.permute.xlu0 %1041
        %v1044 = vsel %vm681, %v1040, 0
        %v1047 = vsel %vm681, %v1042, 0
        %1049 = vmatpush.bf16.xpose.msra.mxu0 0
        %1050 = vmatpush.bf16.xpose.msra.mxu0 0
        %1051 = vmatpush.bf16.xpose.msra.mxu0 0
        %1052 = vmatpush.bf16.xpose.msra.mxu0 0
        %1053 = vmatpush.bf16.xpose.msra.mxu0 0
        %1054 = vmatpush.bf16.xpose.msra.mxu0 0
        %1055 = vmatpush.bf16.xpose.msra.mxu0 0
        %1056 = vmatpush.bf16.xpose.msra.mxu0 %v1047
        %1057 = vmatmul.bf16.gmra.mxu0 %v1044
        %v1058 = vpop.f32.mrf.mxu0
        %v1059 = vadd.f32 %v675, %v1058
        %v1060 = vpop.f32.mrf.mxu0
        %1061 = vdwg.mxu0
        %v1062 = vsel %vm681, %v1036, -inf
        %1063 = vmax.xlane.f32.xlu0 %v1062
        %v1064 = vpop.xlane.xlu0 %1063
        %v1065 = vsel %vm681, %v1059, -inf
        %1066 = vmax.xlane.f32.xlu0 %v1065
        %v1067 = vpop.xlane.xlu0 %1066
        %v1068 = vsub.f32 %v1036, %v1064
        %v1069 = vsub.f32 %v1059, %v1067
        %v1070 = vmul.f32 %v1068, 1.442695
        %v1071 = vpow.pop %v1070
        %v1072 = vmul.f32 %v1069, 1.442695
        %v1073 = vpow.pop %v1072
        %v1074 = vsel %vm681, %v1071, 0.0
        %1075 = vadd.xlane.f32.xlu0 %v1074
        %v1076 = vpop.xlane.xlu0 %1075
        %v1077 = vsel %vm681, %v1073, 0.0
        %1078 = vadd.xlane.f32.xlu0 %v1077
        %v1079 = vpop.xlane.xlu0 %1078
        %v1080 = vrcp.pop %v1076
        %v1081 = vmul.f32 %v1076, %v1080
        %v1082 = vsub.f32 1.0, %v1081
        %v1083 = vmul.f32 %v1080, %v1082
        %v1084 = vadd.f32 %v1080, %v1083
        %vm1085 = vweird.f32 %v1076
        %vm1086 = vweird.f32 %v1080
        %vm1087 = vmor %vm1085, %vm1086
        %v1088 = vsel %vm1087, %v1080, %v1084
        %v1089 = vand.u32 2147483647, %v1076
        %vm1090 = vcmp.eq.f32.partialorder %v1089, 8.507059e+37
        %v1091 = vand.u32 %v1076, 2147483648
        %v1092 = vor.u32 1.1754944e-38, %v1091
        %v1093 = vsel %vm1090, %v1092, %v1088
        %v1094 = vmul.f32 %v1071, %v1093
        %v1095 = vrcp.pop %v1079
        %v1096 = vmul.f32 %v1079, %v1095
        %v1097 = vsub.f32 1.0, %v1096
        %v1098 = vmul.f32 %v1095, %v1097
        %v1099 = vadd.f32 %v1095, %v1098
        %vm1100 = vweird.f32 %v1079
        %vm1101 = vweird.f32 %v1095
        %vm1102 = vmor %vm1100, %vm1101
        %v1103 = vsel %vm1102, %v1095, %v1099
        %v1104 = vand.u32 2147483647, %v1079
        %vm1105 = vcmp.eq.f32.partialorder %v1104, 8.507059e+37
        %v1106 = vand.u32 %v1079, 2147483648
        %v1107 = vor.u32 1.1754944e-38, %v1106
        %v1108 = vsel %vm1105, %v1107, %v1103
        %v1109 = vmul.f32 %v1073, %v1108
        %v1110 = vpack.c.bf16 %v1094, %v1094
        %v1111 = vpack.c.bf16 %v1109, %v1109
        %1112 = vrot.lane.b32.xlu0 %v678, 48
        %v1113 = vpop.permute.xlu0 %1112
        %v1115 = vsel %vm681, %v1110, 0
        %v1118 = vsel %vm780, %v1113, 0
        %1120 = vmatpush.bf16.msra.mxu0 0
        %1121 = vmatpush.bf16.msra.mxu0 0
        %1122 = vmatpush.bf16.msra.mxu0 0
        %1123 = vmatpush.bf16.msra.mxu0 0
        %1124 = vmatpush.bf16.msra.mxu0 0
        %1125 = vmatpush.bf16.msra.mxu0 0
        %1126 = vmatpush.bf16.msra.mxu0 0
        %1127 = vmatpush.bf16.msra.mxu0 %v1118
        %1128 = vmatmul.bf16.gmra.mxu0 %v1115
        %v1129 = vpop.f32.mrf.mxu0
        %v1130 = vadd.f32 0.0, %v1129
        %v1131 = vpop.f32.mrf.mxu0
        %1132 = vdwg.mxu0
        %1133 = vrot.lane.b32.xlu0 %v703, 48
        %v1134 = vpop.permute.xlu0 %1133
        %v1136 = vsel %vm681, %v1111, 0
        %v1139 = vsel %vm780, %v1134, 0
        %1141 = vmatpush.bf16.msra.mxu0 0
        %1142 = vmatpush.bf16.msra.mxu0 0
        %1143 = vmatpush.bf16.msra.mxu0 0
        %1144 = vmatpush.bf16.msra.mxu0 0
        %1145 = vmatpush.bf16.msra.mxu0 0
        %1146 = vmatpush.bf16.msra.mxu0 0
        %1147 = vmatpush.bf16.msra.mxu0 0
        %1148 = vmatpush.bf16.msra.mxu0 %v1139
        %1149 = vmatmul.bf16.gmra.mxu0 %v1136
        %v1150 = vpop.f32.mrf.mxu0
        %v1151 = vadd.f32 0.0, %v1150
        %v1152 = vpop.f32.mrf.mxu0
        %1153 = vdwg.mxu0
        %v1154 = vpack.c.bf16 %v1130, %v1130
        %v1155 = vpack.c.bf16 %v1151, %v1151
        %v1158 = vunpack.c.l.b16 %v1154
        %v1159 = vunpack.c.l.b16 %v1155
        %v1160 = vpack.c.b16 %v1159, %v1158
        %v1162 = vsel %vm681, %v1160, 0
        %v1165 = vsel %vm780, %v673, 0
        %1167 = vmatpush.bf16.msra.mxu0 0
        %1168 = vmatpush.bf16.msra.mxu0 0
        %1169 = vmatpush.bf16.msra.mxu0 0
        %1170 = vmatpush.bf16.msra.mxu0 0
        %1171 = vmatpush.bf16.msra.mxu0 0
        %1172 = vmatpush.bf16.msra.mxu0 0
        %1173 = vmatpush.bf16.msra.mxu0 0
        %1174 = vmatpush.bf16.msra.mxu0 %v1165
        %1175 = vmatmul.bf16.gmra.mxu0 %v1162
        %v1176 = vpop.f32.mrf.mxu0
        %v1177 = vadd.f32 0.0, %v1176
        %v1178 = vpop.f32.mrf.mxu0
        %v1179 = vadd.f32 0.0, %v1178
        %1180 = vdwg.mxu0
        %v1181 = vadd.f32 %v1012, %v1177
        %v1182 = vadd.f32 %v1014, %v1179
        %1183 = vrot.lane.b32.xlu0 %v822, 104
        %v1184 = vpop.permute.xlu0 %1183
        %1185 = vrot.lane.b32.xlu0 %v678, 72
        %v1186 = vpop.permute.xlu0 %1185
        %v1188 = vsel %vm681, %v1184, 0
        %v1191 = vsel %vm681, %v1186, 0
        %1193 = vmatpush.bf16.xpose.msra.mxu0 0
        %1194 = vmatpush.bf16.xpose.msra.mxu0 0
        %1195 = vmatpush.bf16.xpose.msra.mxu0 0
        %1196 = vmatpush.bf16.xpose.msra.mxu0 0
        %1197 = vmatpush.bf16.xpose.msra.mxu0 0
        %1198 = vmatpush.bf16.xpose.msra.mxu0 0
        %1199 = vmatpush.bf16.xpose.msra.mxu0 0
        %1200 = vmatpush.bf16.xpose.msra.mxu0 %v1191
        %1201 = vmatmul.bf16.gmra.mxu0 %v1188
        %v1202 = vpop.f32.mrf.mxu0
        %v1203 = vadd.f32 %v675, %v1202
        %v1204 = vpop.f32.mrf.mxu0
        %1205 = vdwg.mxu0
        %1206 = vrot.lane.b32.xlu0 %v848, 104
        %v1207 = vpop.permute.xlu0 %1206
        %1208 = vrot.lane.b32.xlu0 %v703, 72
        %v1209 = vpop.permute.xlu0 %1208
        %v1211 = vsel %vm681, %v1207, 0
        %v1214 = vsel %vm681, %v1209, 0
        %1216 = vmatpush.bf16.xpose.msra.mxu0 0
        %1217 = vmatpush.bf16.xpose.msra.mxu0 0
        %1218 = vmatpush.bf16.xpose.msra.mxu0 0
        %1219 = vmatpush.bf16.xpose.msra.mxu0 0
        %1220 = vmatpush.bf16.xpose.msra.mxu0 0
        %1221 = vmatpush.bf16.xpose.msra.mxu0 0
        %1222 = vmatpush.bf16.xpose.msra.mxu0 0
        %1223 = vmatpush.bf16.xpose.msra.mxu0 %v1214
        %1224 = vmatmul.bf16.gmra.mxu0 %v1211
        %v1225 = vpop.f32.mrf.mxu0
        %v1226 = vadd.f32 %v675, %v1225
        %v1227 = vpop.f32.mrf.mxu0
        %1228 = vdwg.mxu0
        %v1229 = vsel %vm681, %v1203, -inf
        %1230 = vmax.xlane.f32.xlu0 %v1229
        %v1231 = vpop.xlane.xlu0 %1230
        %v1232 = vsel %vm681, %v1226, -inf
        %1233 = vmax.xlane.f32.xlu0 %v1232
        %v1234 = vpop.xlane.xlu0 %1233
        %v1235 = vsub.f32 %v1203, %v1231
        %v1236 = vsub.f32 %v1226, %v1234
        %v1237 = vmul.f32 %v1235, 1.442695
        %v1238 = vpow.pop %v1237
        %v1239 = vmul.f32 %v1236, 1.442695
        %v1240 = vpow.pop %v1239
        %v1241 = vsel %vm681, %v1238, 0.0
        %1242 = vadd.xlane.f32.xlu0 %v1241
        %v1243 = vpop.xlane.xlu0 %1242
        %v1244 = vsel %vm681, %v1240, 0.0
        %1245 = vadd.xlane.f32.xlu0 %v1244
        %v1246 = vpop.xlane.xlu0 %1245
        %v1247 = vrcp.pop %v1243
        %v1248 = vmul.f32 %v1243, %v1247
        %v1249 = vsub.f32 1.0, %v1248
        %v1250 = vmul.f32 %v1247, %v1249
        %v1251 = vadd.f32 %v1247, %v1250
        %vm1252 = vweird.f32 %v1243
        %vm1253 = vweird.f32 %v1247
        %vm1254 = vmor %vm1252, %vm1253
        %v1255 = vsel %vm1254, %v1247, %v1251
        %v1256 = vand.u32 2147483647, %v1243
        %vm1257 = vcmp.eq.f32.partialorder %v1256, 8.507059e+37
        %v1258 = vand.u32 %v1243, 2147483648
        %v1259 = vor.u32 1.1754944e-38, %v1258
        %v1260 = vsel %vm1257, %v1259, %v1255
        %v1261 = vmul.f32 %v1238, %v1260
        %v1262 = vrcp.pop %v1246
        %v1263 = vmul.f32 %v1246, %v1262
        %v1264 = vsub.f32 1.0, %v1263
        %v1265 = vmul.f32 %v1262, %v1264
        %v1266 = vadd.f32 %v1262, %v1265
        %vm1267 = vweird.f32 %v1246
        %vm1268 = vweird.f32 %v1262
        %vm1269 = vmor %vm1267, %vm1268
        %v1270 = vsel %vm1269, %v1262, %v1266
        %v1271 = vand.u32 2147483647, %v1246
        %vm1272 = vcmp.eq.f32.partialorder %v1271, 8.507059e+37
        %v1273 = vand.u32 %v1246, 2147483648
        %v1274 = vor.u32 1.1754944e-38, %v1273
        %v1275 = vsel %vm1272, %v1274, %v1270
        %v1276 = vmul.f32 %v1240, %v1275
        %v1277 = vpack.c.bf16 %v1261, %v1261
        %v1278 = vpack.c.bf16 %v1276, %v1276
        %1279 = vrot.lane.b32.xlu0 %v678, 40
        %v1280 = vpop.permute.xlu0 %1279
        %v1282 = vsel %vm681, %v1277, 0
        %v1285 = vsel %vm780, %v1280, 0
        %1287 = vmatpush.bf16.msra.mxu0 0
        %1288 = vmatpush.bf16.msra.mxu0 0
        %1289 = vmatpush.bf16.msra.mxu0 0
        %1290 = vmatpush.bf16.msra.mxu0 0
        %1291 = vmatpush.bf16.msra.mxu0 0
        %1292 = vmatpush.bf16.msra.mxu0 0
        %1293 = vmatpush.bf16.msra.mxu0 0
        %1294 = vmatpush.bf16.msra.mxu0 %v1285
        %1295 = vmatmul.bf16.gmra.mxu0 %v1282
        %v1296 = vpop.f32.mrf.mxu0
        %v1297 = vadd.f32 0.0, %v1296
        %v1298 = vpop.f32.mrf.mxu0
        %1299 = vdwg.mxu0
        %1300 = vrot.lane.b32.xlu0 %v703, 40
        %v1301 = vpop.permute.xlu0 %1300
        %v1303 = vsel %vm681, %v1278, 0
        %v1306 = vsel %vm780, %v1301, 0
        %1308 = vmatpush.bf16.msra.mxu0 0
        %1309 = vmatpush.bf16.msra.mxu0 0
        %1310 = vmatpush.bf16.msra.mxu0 0
        %1311 = vmatpush.bf16.msra.mxu0 0
        %1312 = vmatpush.bf16.msra.mxu0 0
        %1313 = vmatpush.bf16.msra.mxu0 0
        %1314 = vmatpush.bf16.msra.mxu0 0
        %1315 = vmatpush.bf16.msra.mxu0 %v1306
        %1316 = vmatmul.bf16.gmra.mxu0 %v1303
        %v1317 = vpop.f32.mrf.mxu0
        %v1318 = vadd.f32 0.0, %v1317
        %v1319 = vpop.f32.mrf.mxu0
        %1320 = vdwg.mxu0
        %v1321 = vpack.c.bf16 %v1297, %v1297
        %v1322 = vpack.c.bf16 %v1318, %v1318
        %v1325 = vunpack.c.l.b16 %v1321
        %v1326 = vunpack.c.l.b16 %v1322
        %v1327 = vpack.c.b16 %v1326, %v1325
        %v1329 = vsel %vm681, %v1327, 0
        %v1332 = vsel %vm780, %v674, 0
        %1334 = vmatpush.bf16.msra.mxu0 0
        %1335 = vmatpush.bf16.msra.mxu0 0
        %1336 = vmatpush.bf16.msra.mxu0 0
        %1337 = vmatpush.bf16.msra.mxu0 0
        %1338 = vmatpush.bf16.msra.mxu0 0
        %1339 = vmatpush.bf16.msra.mxu0 0
        %1340 = vmatpush.bf16.msra.mxu0 0
        %1341 = vmatpush.bf16.msra.mxu0 %v1332
        %1342 = vmatmul.bf16.gmra.mxu0 %v1329
        %v1343 = vpop.f32.mrf.mxu0
        %v1344 = vadd.f32 0.0, %v1343
        %v1345 = vpop.f32.mrf.mxu0
        %v1346 = vadd.f32 0.0, %v1345
        %1347 = vdwg.mxu0
        %v1348 = vadd.f32 %v1181, %v1344
        %v1349 = vadd.f32 %v1182, %v1346
        %v1350 = vadd.f32 %v566, %v1348
        %v1351 = vadd.f32 %v567, %v1349
        %v1352 = vperm.slane %v568, 4
        %v1353 = vadd.f32 %v1350, %v1352
        %v1354 = vadd.f32 %v1351, %v1352
        %v1355 = vsel %vm569, %v1353, 0.0
        %1356 = vadd.xlane.f32.xlu0 %v1355
        %v1357 = vpop.xlane.xlu0 %1356
        %v1358 = vsel %vm569, %v1354, 0.0
        %1359 = vadd.xlane.f32.xlu0 %v1358
        %v1360 = vpop.xlane.xlu0 %1359
        %v1361 = vmul.f32 %v1357, %v582
        %v1362 = vmul.f32 %v1360, %v582
        %v1363 = vsub.f32 %v1353, %v1361
        %v1364 = vsub.f32 %v1354, %v1362
        %v1365 = vmul.f32 %v1363, %v1363
        %v1366 = vmul.f32 %v1364, %v1364
        %v1367 = vsel %vm569, %v1365, 0.0
        %1368 = vadd.xlane.f32.xlu0 %v1367
        %v1369 = vpop.xlane.xlu0 %1368
        %v1370 = vsel %vm569, %v1366, 0.0
        %1371 = vadd.xlane.f32.xlu0 %v1370
        %v1372 = vpop.xlane.xlu0 %1371
        %v1373 = vmul.f32 %v1369, %v582
        %v1374 = vmul.f32 %v1372, %v582
        %v1375 = vadd.f32 %v1373, 1e-05
        %v1376 = vadd.f32 %v1374, 1e-05
        %v1377 = vrsqrt.pop %v1375
        %v1378 = vmul.f32 %v1377, %v1375
        %v1379 = vmul.f32 %v1378, %v1377
        %v1380 = vmul.f32 0.5, %v1379
        %v1381 = vsub.f32 1.5, %v1380
        %v1382 = vmul.f32 %v1377, %v1381
        %vm1383 = vweird.f32 %v1375
        %vm1384 = vweird.f32 %v1377
        %vm1385 = vmor %vm1383, %vm1384
        %v1386 = vsel %vm1385, %v1377, %v1382
        %v1387 = vrsqrt.pop %v1376
        %v1388 = vmul.f32 %v1387, %v1376
        %v1389 = vmul.f32 %v1388, %v1387
        %v1390 = vmul.f32 0.5, %v1389
        %v1391 = vsub.f32 1.5, %v1390
        %v1392 = vmul.f32 %v1387, %v1391
        %vm1393 = vweird.f32 %v1376
        %vm1394 = vweird.f32 %v1387
        %vm1395 = vmor %vm1393, %vm1394
        %v1396 = vsel %vm1395, %v1387, %v1392
        %v1397 = vmul.f32 %v1363, %v1386
        %v1398 = vmul.f32 %v1364, %v1396
        %v1399 = vperm.slane %v568, 2
        %v1400 = vmul.f32 %v1397, %v1399
        %v1401 = vmul.f32 %v1398, %v1399
        %v1402 = vperm.slane %v568, 3
        %v1403 = vadd.f32 %v1400, %v1402
        %v1404 = vadd.f32 %v1401, %v1402
        %v1405 = vpack.c.bf16 %v1404, %v1403
        %v1406 = vld [vmem:[%s544] sm:$0xf]
        %v1407 = vld [vmem:[%s544 + $0x4] sm:$0xf]
        %v1408 = vld [vmem:[%s544 + $0x8] sm:$0xf]
        %v1409 = vld [vmem:[%s544 + $0xc] sm:$0xf]
        %v1410 = vld [vmem:[%s547] sm:$0x1]
        %v1412 = vperm.slane %v1410, 0
        %v1418 = vunpack.c.l.b16 %v1406
        %v1419 = vunpack.c.l.b16 %v1407
        %v1420 = vunpack.c.l.b16 %v1408
        %v1421 = vunpack.c.l.b16 %v1409
        %v1422 = vpack.c.b16 %v1419, %v1418
        %v1423 = vpack.c.b16 %v1421, %v1420
        %v1427 = vsel %vm569, %v1405, 0
        %1429 = vmatpush.bf16.msra.mxu0 0
        %1430 = vmatpush.bf16.msra.mxu0 0
        %1431 = vmatpush.bf16.msra.mxu0 0
        %1432 = vmatpush.bf16.msra.mxu0 0
        %1433 = vmatpush.bf16.msra.mxu0 0
        %1434 = vmatpush.bf16.msra.mxu0 0
        %1435 = vmatpush.bf16.msra.mxu0 %v1423
        %1436 = vmatpush.bf16.msra.mxu0 %v1422
        %1437 = vmatmul.bf16.gmra.mxu0 %v1427
        %v1438 = vpop.f32.mrf.mxu0
        %v1439 = vadd.f32 %v1412, %v1438
        %v1440 = vpop.f32.mrf.mxu0
        %v1441 = vadd.f32 %v1412, %v1440
        %1442 = vdwg.mxu0
        %v1443 = vmul.f32 %v1439, 1.702
        %v1444 = vmul.f32 %v1441, 1.702
        %v1445 = vxor.u32 %v1443, 2147483648
        %v1446 = vxor.u32 %v1444, 2147483648
        %v1447 = vmul.f32 %v1445, 1.442695
        %v1448 = vpow.pop %v1447
        %v1449 = vmul.f32 %v1446, 1.442695
        %v1450 = vpow.pop %v1449
        %v1451 = vadd.f32 %v1448, 1.0
        %v1452 = vadd.f32 %v1450, 1.0
        %v1453 = vrcp.pop %v1451
        %v1454 = vmul.f32 %v1451, %v1453
        %v1455 = vsub.f32 1.0, %v1454
        %v1456 = vmul.f32 %v1453, %v1455
        %v1457 = vadd.f32 %v1453, %v1456
        %vm1458 = vweird.f32 %v1451
        %vm1459 = vweird.f32 %v1453
        %vm1460 = vmor %vm1458, %vm1459
        %v1461 = vsel %vm1460, %v1453, %v1457
        %v1462 = vand.u32 2147483647, %v1451
        %vm1463 = vcmp.eq.f32.partialorder %v1462, 8.507059e+37
        %v1464 = vand.u32 %v1451, 2147483648
        %v1465 = vor.u32 1.1754944e-38, %v1464
        %v1466 = vsel %vm1463, %v1465, %v1461
        %v1467 = vmul.f32 1.0, %v1466
        %v1468 = vrcp.pop %v1452
        %v1469 = vmul.f32 %v1452, %v1468
        %v1470 = vsub.f32 1.0, %v1469
        %v1471 = vmul.f32 %v1468, %v1470
        %v1472 = vadd.f32 %v1468, %v1471
        %vm1473 = vweird.f32 %v1452
        %vm1474 = vweird.f32 %v1468
        %vm1475 = vmor %vm1473, %vm1474
        %v1476 = vsel %vm1475, %v1468, %v1472
        %v1477 = vand.u32 2147483647, %v1452
        %vm1478 = vcmp.eq.f32.partialorder %v1477, 8.507059e+37
        %v1479 = vand.u32 %v1452, 2147483648
        %v1480 = vor.u32 1.1754944e-38, %v1479
        %v1481 = vsel %vm1478, %v1480, %v1476
        %v1482 = vmul.f32 1.0, %v1481
        %v1483 = vmul.f32 %v1439, %v1467
        %v1484 = vmul.f32 %v1441, %v1482
        %v1485 = vpack.c.bf16 %v1484, %v1483
        %v1486 = vld [vmem:[%s552] sm:$0xf]
        %v1487 = vld [vmem:[%s552 + $0x4] sm:$0xf]
        %v1488 = vld [vmem:[%s552 + $0x8] sm:$0xf]
        %v1489 = vld [vmem:[%s552 + $0xc] sm:$0xf]
        %v1490 = vld [vmem:[%s552 + $0x10] sm:$0xf]
        %v1491 = vld [vmem:[%s552 + $0x14] sm:$0xf]
        %v1492 = vld [vmem:[%s552 + $0x18] sm:$0xf]
        %v1493 = vld [vmem:[%s552 + $0x1c] sm:$0xf]
        %v1494 = vld [vmem:[%s552 + $0x20] sm:$0xf]
        %v1495 = vld [vmem:[%s552 + $0x24] sm:$0xf]
        %v1496 = vld [vmem:[%s552 + $0x28] sm:$0xf]
        %v1497 = vld [vmem:[%s552 + $0x2c] sm:$0xf]
        %v1498 = vld [vmem:[%s552 + $0x30] sm:$0xf]
        %v1499 = vld [vmem:[%s552 + $0x34] sm:$0xf]
        %v1500 = vld [vmem:[%s552 + $0x38] sm:$0xf]
        %v1501 = vld [vmem:[%s552 + $0x3c] sm:$0xf]
        %v1502 = vperm.slane %v568, 5
        %v1519 = vunpack.c.l.b16 %v1486
        %v1520 = vunpack.c.l.b16 %v1487
        %v1521 = vunpack.c.l.b16 %v1488
        %v1522 = vunpack.c.l.b16 %v1489
        %v1523 = vunpack.c.l.b16 %v1490
        %v1524 = vunpack.c.l.b16 %v1491
        %v1525 = vunpack.c.l.b16 %v1492
        %v1526 = vunpack.c.l.b16 %v1493
        %v1527 = vunpack.c.l.b16 %v1494
        %v1528 = vunpack.c.l.b16 %v1495
        %v1529 = vunpack.c.l.b16 %v1496
        %v1530 = vunpack.c.l.b16 %v1497
        %v1531 = vunpack.c.l.b16 %v1498
        %v1532 = vunpack.c.l.b16 %v1499
        %v1533 = vunpack.c.l.b16 %v1500
        %v1534 = vunpack.c.l.b16 %v1501
        %v1535 = vpack.c.b16 %v1520, %v1519
        %v1536 = vpack.c.b16 %v1522, %v1521
        %v1537 = vpack.c.b16 %v1524, %v1523
        %v1538 = vpack.c.b16 %v1526, %v1525
        %v1539 = vpack.c.b16 %v1528, %v1527
        %v1540 = vpack.c.b16 %v1530, %v1529
        %v1541 = vpack.c.b16 %v1532, %v1531
        %v1542 = vpack.c.b16 %v1534, %v1533
        %1551 = vmatpush.bf16.msra.mxu0 %v1542
        %1552 = vmatpush.bf16.msra.mxu0 %v1541
        %1553 = vmatpush.bf16.msra.mxu0 %v1540
        %1554 = vmatpush.bf16.msra.mxu0 %v1539
        %1555 = vmatpush.bf16.msra.mxu0 %v1538
        %1556 = vmatpush.bf16.msra.mxu0 %v1537
        %1557 = vmatpush.bf16.msra.mxu0 %v1536
        %1558 = vmatpush.bf16.msra.mxu0 %v1535
        %1559 = vmatmul.bf16.gmra.mxu0 %v1485
        %v1560 = vpop.f32.mrf.mxu0
        %v1561 = vadd.f32 %v1502, %v1560
        %v1562 = vpop.f32.mrf.mxu0
        %v1563 = vadd.f32 %v1502, %v1562
        %1564 = vdwg.mxu0
        %v1565 = vadd.f32 %v1353, %v1561
        %v1566 = vadd.f32 %v1354, %v1563
        %1567 = vst.msk [vmem:[#allocation2] sm:$0xff] %vm569, %v1565
        %1568 = vst.msk [vmem:[#allocation2 + $0x8] sm:$0xff] %vm569, %v1566
        %p1569 = scmp.eq.s32.totalorder %s38, 1
        // Predicated region
        $region73: #{tpu_custom_call.1} parent=67 // pred_check
          %p1570 = pneg %p1569
        $region74: #{tpu_custom_call.1} parent=67 // pred_check_branch
          %1572 = sbr.rel (%p1570) target = $region76
        $region75: #{tpu_custom_call.1} parent=67 // pred_region
          %v1573 = vld [vmem:[%s11] sm:$0x3]
          %s1574 = smul.u32 %s37, 2
          %s1575 = sld [smem:[#allocation4 + %s1574]]
          %s1576 = scalar_lea.vmem [#allocation2], %s1575
          %v1577 = vld [vmem:[%s1576] sm:$0x1]
          %s1578 = sadd.s32 %s1574, 1
          %s1579 = sld [smem:[#allocation4 + %s1578]]
          %s1580 = sadd.s32 %s1579, 8
          %s1581 = scalar_lea.vmem [#allocation2], %s1580
          %v1582 = vld [vmem:[%s1581] sm:$0x1]
          %v1584 = vrot.slane %v1582, 7
          %vm1586 = vcmask 1040384
          %v1587 = vsel %vm1586, %v1577, %v1584
          %vm1588 = vcmask 254976
          %v1589 = vsel %vm1588, %v1587, 0.0
          %1590 = vadd.xlane.f32.xlu0 %v1589
          %v1591 = vpop.xlane.xlu0 %1590
          %v1592 = vmul.f32 %v1591, %v582
          %v1593 = vsub.f32 %v1587, %v1592
          %v1594 = vmul.f32 %v1593, %v1593
          %v1595 = vsel %vm1588, %v1594, 0.0
          %1596 = vadd.xlane.f32.xlu0 %v1595
          %v1597 = vpop.xlane.xlu0 %1596
          %v1598 = vmul.f32 %v1597, %v582
          %v1599 = vadd.f32 %v1598, 1e-05
          %v1600 = vrsqrt.pop %v1599
          %v1601 = vmul.f32 %v1600, %v1599
          %v1602 = vmul.f32 %v1601, %v1600
          %v1603 = vmul.f32 0.5, %v1602
          %v1604 = vsub.f32 1.5, %v1603
          %v1605 = vmul.f32 %v1600, %v1604
          %vm1606 = vweird.f32 %v1599
          %vm1607 = vweird.f32 %v1600
          %vm1608 = vmor %vm1606, %vm1607
          %v1609 = vsel %vm1608, %v1600, %v1605
          %v1610 = vmul.f32 %v1593, %v1609
          %v1611 = vperm.slane %v1573, 0
          %v1612 = vmul.f32 %v1610, %v1611
          %v1613 = vperm.slane %v1573, 1
          %v1614 = vadd.f32 %v1612, %v1613
          %v1615 = vpack.c.bf16 %v1614, %v1614
          %v1616 = vld [vmem:[%s12] sm:$0xf]
          %v1617 = vld [vmem:[%s12 + $0x4] sm:$0xf]
          %v1618 = vld [vmem:[%s12 + $0x8] sm:$0xf]
          %v1619 = vld [vmem:[%s12 + $0xc] sm:$0xf]
          %v1624 = vunpack.c.l.b16 %v1616
          %v1625 = vunpack.c.l.b16 %v1617
          %v1626 = vunpack.c.l.b16 %v1618
          %v1627 = vunpack.c.l.b16 %v1619
          %v1628 = vpack.c.b16 %v1625, %v1624
          %v1629 = vpack.c.b16 %v1627, %v1626
          %v1633 = vsel %vm569, %v1615, 0
          %1635 = vmatpush.bf16.msra.mxu0 0
          %1636 = vmatpush.bf16.msra.mxu0 0
          %1637 = vmatpush.bf16.msra.mxu0 0
          %1638 = vmatpush.bf16.msra.mxu0 0
          %1639 = vmatpush.bf16.msra.mxu0 0
          %1640 = vmatpush.bf16.msra.mxu0 0
          %1641 = vmatpush.bf16.msra.mxu0 %v1629
          %1642 = vmatpush.bf16.msra.mxu0 %v1628
          %1643 = vmatmul.bf16.gmra.mxu0 %v1633
          %v1644 = vpop.f32.mrf.mxu0
          %v1645 = vadd.f32 0.0, %v1644
          %v1646 = vpop.f32.mrf.mxu0
          %1647 = vdwg.mxu0
          %vm1648 = vcmask 123904
          %1649 = vst.msk [vmem:[#allocation5] sm:$0x3] %vm1648, %v1645
        $region76: #{tpu_custom_call.1} parent=67 // pred_fallthru
          _
        // Predicated region
        $region77: #{tpu_custom_call.1} parent=67 // pred_check
          %p1650 = pneg %p355
        $region78: #{tpu_custom_call.1} parent=67 // pred_check_branch
          %1652 = sbr.rel (%p1650) target = $region80
        $region79: #{tpu_custom_call.1} parent=67 // pred_region
          %1654 = vsyncadd [#allocation6], 0
          %s1655 = smul.addr %s37, 2
          %s1656 = scalar_lea.hbm %s13, %s1655
          %s1658 = sshll.u32 [#allocation5], 4
          %s1659 = int_to_ptr.vmem [resolvable:$true] %s1658
          %s1660 = sshll.u32 %s1656, 4
          %s1661 = int_to_ptr.hbm [resolvable:$true] %s1660
          %1663 = dma.vmem_to_hbm [thread:$0]  %s1659, 32, %s1661, [#allocation6]
        $region80: #{tpu_custom_call.1} parent=67 // pred_fallthru
          _
        // Predicated region
        $region81: #{tpu_custom_call.1} parent=67 // pred_check
          %p1664 = pneg %p355
        $region82: #{tpu_custom_call.1} parent=67 // pred_check_branch
          %1666 = sbr.rel (%p1664) target = $region84
        $region83: #{tpu_custom_call.1} parent=67 // pred_region
          %1668 = dma.done [#allocation6], 32
        $region84: #{tpu_custom_call.1} parent=67 // pred_fallthru
          _
      $region68: #{tpu_custom_call.1} parent=5 // pred_fallthru
        _
      %p1669 = scmp.le.s32.totalorder 2, %s28
      // Predicated region
      $region85: #{tpu_custom_call.1} parent=5 // pred_check
        %p1670 = pneg %p1669
      $region86: #{tpu_custom_call.1} parent=5 // pred_check_branch
        %1672 = sbr.rel (%p1670) target = $region88
      $region87: #{tpu_custom_call.1} parent=5 // pred_region
        %s1673 = ssub.s32 %s28, 2
      $region88: #{tpu_custom_call.1} parent=5 // pred_fallthru
        _
    $region6: #{tpu_custom_call.1} parent=1 // loop_footer
      %s32 = sadd.s32 1, %s28
    $region7: #{tpu_custom_call.1} parent=1 // loop_footer_branch
      %27 = sbr.rel target = $region3
    $region8: #{tpu_custom_call.1} parent=1 // loop_exit
      _
    %1674 = vsyncpa [#allocation6], 1
    %s1675 = scalar_lea.sflag [#allocation6], 1
    %1676 = vsyncpa %s1675, 1

</llo_original>
